<compile_context>
chip_gen: v5e
topology: v5e:2x2
jax: 0.10.0
libtpu: 0.0.40
codegen_flags: <defaults>
</compile_context>

<pallas_src>
import functools

import jax
import jax.numpy as jnp
from jax.experimental import pallas as pl
from jax.experimental.pallas import tpu as pltpu


def _mhsa_kernel(x_ref, wqkv_ref, wproj_ref, bproj_ref, o_ref,
                 *, num_heads, head_dim, block_b, seq_pad, seq_len):
    H, hd, Np, TB = num_heads, head_dim, seq_pad, block_b
    C = H * hd
    M = TB * Np                       # activation rows in this block

    x = x_ref[...]                                                    # (M, C) bf16

    # ---- QKV projection: one lane-dense GEMM (scale pre-folded into q cols) --
    qkv = jnp.dot(x, wqkv_ref[...],
                  preferred_element_type=jnp.float32).astype(jnp.bfloat16)  # (M, 3C)

    if Np != seq_len:
        # Mask padded key positions (padding rows of x are zero; their outputs
        # are dropped in the wrapper).
        key_valid = jax.lax.broadcasted_iota(jnp.int32, (1, 1, Np), 2) < seq_len

    # ---- attention per head + lane-dense per-head output projection ----------
    acc = jnp.zeros((M, C), jnp.float32)
    for h in range(H):
        q = qkv[:, h * hd:(h + 1) * hd].reshape(TB, Np, hd)
        k = qkv[:, (H + h) * hd:(H + h + 1) * hd].reshape(TB, Np, hd)
        v = qkv[:, (2 * H + h) * hd:(2 * H + h + 1) * hd].reshape(TB, Np, hd)

        s = jax.lax.dot_general(q, k, (((2,), (2,)), ((0,), (0,))),
                                preferred_element_type=jnp.float32)   # (TB, Np, Np)
        if Np != seq_len:
            s = jnp.where(key_valid, s, -jnp.inf)
        s = s - jnp.max(s, axis=-1, keepdims=True)
        p = jnp.exp(s)
        p = (p * pl.reciprocal(jnp.sum(p, axis=-1, keepdims=True), approx=True)
             ).astype(jnp.bfloat16)
        # attn_drop(p=0.0) is the identity.

        oh = jax.lax.dot_general(p, v, (((2,), (1,)), ((0,), (0,))),
                                 preferred_element_type=jnp.float32
                                 ).astype(jnp.bfloat16)               # (TB, Np, hd)

        # Output projection partial product: (M, hd) @ (hd, C), f32 accumulate.
        acc = acc + jnp.dot(oh.reshape(M, hd), wproj_ref[h],
                            preferred_element_type=jnp.float32)

    # proj_drop(p=0.0) is the identity.
    o_ref[...] = (acc + bproj_ref[...]).astype(o_ref.dtype)


def _step_vmem_bytes(block_b, n_pad, C, hd, out_itemsize):
    """Rough per-grid-step VMEM footprint used to size block_b."""
    M = block_b * n_pad
    x_blk = 2 * M * C * 2                                 # bf16 input block, 2 buffers
    o_blk = 2 * M * C * out_itemsize                      # output block, 2 buffers
    w = 2 * (3 * C * C + C * C) * 2 + 2 * C * 4           # resident weights (2x) + bias
    qkv = M * 3 * C * 2                                   # bf16 qkv slab
    acc = M * C * 4                                       # f32 proj accumulator
    attn = 2 * (block_b * n_pad * n_pad * (4 + 2) + M * hd * 2)  # a couple of head temps
    return x_blk + o_blk + w + qkv + acc + attn


def _choose_block_b(B, n_pad, C, hd, out_itemsize, budget_bytes):
    min_steps = min(4, B)             # >= 2 steps for pipelining / dual-core when possible
    for d in range(B, 0, -1):
        if B % d:
            continue
        if B // d < min_steps:
            continue
        if _step_vmem_bytes(d, n_pad, C, hd, out_itemsize) <= budget_bytes:
            return d
    return 1


def mhsa_forward(x, w_qkv, w_proj, b_proj, *, num_heads, block_b=None):
    """x: (B, N, C); w_qkv: (3C, C) PyTorch (out,in) layout; w_proj: (C, C); b_proj: (C,)."""
    B, N, C = x.shape
    assert C % num_heads == 0
    head_dim = C // num_heads
    scale = head_dim ** (-0.5)

    n_pad = ((N + 7) // 8) * 8        # TODO(synk): pad to 128 lanes for real N=197 dims.

    # ---- wrapper-side weight prep (a real model would store these once) ------
    # qkv weight -> (C, 3C) with the attention scale folded into the q columns.
    wqkv_t = jnp.asarray(w_qkv, jnp.float32).T            # col index = s*C + h*hd + d
    wqkv_t = wqkv_t.at[:, :C].multiply(scale)
    wqkv_t = wqkv_t.astype(jnp.bfloat16)
    # proj weight -> (H, hd, C_out) bf16; row index of w_proj.T is h*hd + d.
    wproj_h = (jnp.asarray(w_proj, jnp.float32).T
               .reshape(num_heads, head_dim, C)
               .astype(jnp.bfloat16))
    bproj_2d = jnp.asarray(b_proj, jnp.float32).reshape(1, C)

    # bf16 activations, zero-padded along N, presented as a 2-D (B*Np, C) slab.
    xb = x.astype(jnp.bfloat16)
    if n_pad != N:
        xb = jnp.pad(xb, ((0, 0), (0, n_pad - N), (0, 0)))
    x2d = xb.reshape(B * n_pad, C)

    out_itemsize = jnp.dtype(x.dtype).itemsize
    if block_b is None:
        block_b = _choose_block_b(B, n_pad, C, head_dim, out_itemsize,
                                  budget_bytes=40 * 1024 * 1024)
    assert B % block_b == 0, "block_b must divide B"
    rows = block_b * n_pad

    kernel = functools.partial(
        _mhsa_kernel, num_heads=num_heads, head_dim=head_dim,
        block_b=block_b, seq_pad=n_pad, seq_len=N)

    out2d = pl.pallas_call(
        kernel,
        out_shape=jax.ShapeDtypeStruct((B * n_pad, C), x.dtype),
        grid_spec=pltpu.PrefetchScalarGridSpec(
            num_scalar_prefetch=0,
            grid=(B // block_b,),
            in_specs=[
                pl.BlockSpec((rows, C), lambda b: (b, 0)),                    # x slab
                pl.BlockSpec((C, 3 * C), lambda b: (0, 0)),                   # qkv W (resident)
                pl.BlockSpec((num_heads, head_dim, C), lambda b: (0, 0, 0)),  # proj W (resident)
                pl.BlockSpec((1, C), lambda b: (0, 0)),                       # proj bias
            ],
            out_specs=pl.BlockSpec((rows, C), lambda b: (b, 0)),
        ),
        compiler_params=pltpu.CompilerParams(
            dimension_semantics=("parallel",),
            vmem_limit_bytes=48 * 1024 * 1024),
    )(x2d, wqkv_t, wproj_h, bproj_2d)

    out = out2d.reshape(B, n_pad, C)
    if n_pad != N:
        out = out[:, :N, :]
    return out


def mhsa_reference(x, w_qkv, w_proj, b_proj, *, num_heads):
    """Plain-JAX (f32) reference mirroring the PyTorch forward."""
    B, N, C = x.shape
    hd = C // num_heads
    scale = hd ** (-0.5)
    qkv = jnp.einsum('bnc,oc->bno', x, w_qkv)                 # (B, N, 3C)
    qkv = qkv.reshape(B, N, 3, num_heads, hd).transpose(2, 0, 3, 1, 4)
    q, k, v = qkv[0], qkv[1], qkv[2]                          # (B, H, N, hd)
    attn = jnp.einsum('bhnd,bhmd->bhnm', q, k) * scale
    attn = jax.nn.softmax(attn, axis=-1)
    out = jnp.einsum('bhnm,bhmd->bhnd', attn, v)              # (B, H, N, hd)
    out = out.transpose(0, 2, 1, 3).reshape(B, N, C)
    return jnp.einsum('bnc,oc->bno', out, w_proj) + b_proj


if __name__ == "__main__":
    B, N, C = 2, 16, 64
    num_heads = 8

    key = jax.random.PRNGKey(0)
    kx, kw1, kw2, kb, kx2 = jax.random.split(key, 5)

    x = jax.random.normal(kx, (B, N, C), dtype=jnp.float32)
    # deterministic synthetic parameters (PyTorch nn.Linear shapes: (out, in))
    w_qkv = jax.random.normal(kw1, (3 * C, C), dtype=jnp.float32) * (1.0 / C ** 0.5)
    w_proj = jax.random.normal(kw2, (C, C), dtype=jnp.float32) * (1.0 / C ** 0.5)
    b_proj = jax.random.normal(kb, (C,), dtype=jnp.float32) * 0.02

    y = jax.block_until_ready(
        mhsa_forward(x, w_qkv, w_proj, b_proj, num_heads=num_heads))
    y_ref = mhsa_reference(x, w_qkv, w_proj, b_proj, num_heads=num_heads)
    # bf16 MXU inputs (weights / activations / probabilities) -> loosened tolerance.
    max_err = jnp.max(jnp.abs(y - y_ref))
    assert jnp.allclose(y, y_ref, atol=5e-2, rtol=5e-2), f"max abs err = {max_err}"

    # Odd sequence length: exercises the pad-to-multiple-of-8 + key-mask path
    # (the ConViT N = 197 case, previously a block_b=1 fallback).
    N2 = 13
    x2 = jax.random.normal(kx2, (B, N2, C), dtype=jnp.float32)
    y2 = jax.block_until_ready(
        mhsa_forward(x2, w_qkv, w_proj, b_proj, num_heads=num_heads))
    y2_ref = mhsa_reference(x2, w_qkv, w_proj, b_proj, num_heads=num_heads)
    max_err2 = jnp.max(jnp.abs(y2 - y2_ref))
    assert jnp.allclose(y2, y2_ref, atol=5e-2, rtol=5e-2), f"max abs err = {max_err2}"

    print("KERNEL_OK")
</pallas_src>

<mosaic_0001>
module attributes {stable_mosaic.version = 11 : i64} {
  func.func @_mhsa_kernel(%arg0: i32, %arg1: memref<16x64xbf16, #tpu.memory_space<vmem>>, %arg2: memref<64x192xbf16, #tpu.memory_space<vmem>>, %arg3: memref<8x8x64xbf16, #tpu.memory_space<vmem>>, %arg4: memref<1x64xf32, #tpu.memory_space<vmem>>, %arg5: memref<16x64xf32, #tpu.memory_space<vmem>>) attributes {dimension_semantics = [#tpu.dimension_semantics<parallel>], iteration_bounds = array<i64: 2>, scalar_prefetch = 0 : i64, scratch_operands = 0 : i64, tpu.core_type = #tpu.core_type<tc>, window_params = [{transform_indices = @transform_0, window_bounds = array<i64: 16, 64>}, {pipeline_mode = #tpu.pipeline_mode<synchronous>, transform_indices = @transform_1, window_bounds = array<i64: 64, 192>}, {pipeline_mode = #tpu.pipeline_mode<synchronous>, transform_indices = @transform_2, window_bounds = array<i64: 8, 8, 64>}, {pipeline_mode = #tpu.pipeline_mode<synchronous>, transform_indices = @transform_3, window_bounds = array<i64: 1, 64>}, {transform_indices = @transform_4, window_bounds = array<i64: 16, 64>}]} {
    %c0 = arith.constant 0 : index
    %c0_0 = arith.constant 0 : index
    %0 = vector.load %arg1[%c0, %c0_0] : memref<16x64xbf16, #tpu.memory_space<vmem>>, vector<16x64xbf16>
    %c0_1 = arith.constant 0 : index
    %c0_2 = arith.constant 0 : index
    %1 = vector.load %arg2[%c0_1, %c0_2] : memref<64x192xbf16, #tpu.memory_space<vmem>>, vector<64x192xbf16>
    %cst = arith.constant dense<0.000000e+00> : vector<16x192xf32>
    %2 = tpu.matmul %0, %1, %cst {dimension_numbers = #tpu.dot_dimension_numbers<[1], [0], [0], [1], [0, 0, 1, 1], [], []>} : vector<16x64xbf16>, vector<64x192xbf16>, vector<16x192xf32> -> vector<16x192xf32>
    %3 = arith.truncf %2 : vector<16x192xf32> to vector<16x192xbf16>
    %cst_3 = arith.constant 0.000000e+00 : f32
    %4 = vector.broadcast %cst_3 : f32 to vector<16x64xf32>
    %5 = vector.extract_strided_slice %3 {offsets = [0, 0], sizes = [16, 8], strides = [1, 1]} : vector<16x192xbf16> to vector<16x8xbf16>
    %6 = vector.shape_cast %5 : vector<16x8xbf16> to vector<1x16x8xbf16>
    %7 = vector.extract_strided_slice %3 {offsets = [0, 64], sizes = [16, 8], strides = [1, 1]} : vector<16x192xbf16> to vector<16x8xbf16>
    %8 = vector.shape_cast %7 : vector<16x8xbf16> to vector<1x16x8xbf16>
    %9 = vector.extract_strided_slice %3 {offsets = [0, 128], sizes = [16, 8], strides = [1, 1]} : vector<16x192xbf16> to vector<16x8xbf16>
    %10 = vector.shape_cast %9 : vector<16x8xbf16> to vector<1x16x8xbf16>
    %cst_4 = arith.constant dense<0.000000e+00> : vector<1x16x16xf32>
    %11 = tpu.matmul %6, %8, %cst_4 {dimension_numbers = #tpu.dot_dimension_numbers<[2], [2], [1], [1], [0, 0, 0, 1, 1, 1], [0], [0]>} : vector<1x16x8xbf16>, vector<1x16x8xbf16>, vector<1x16x16xf32> -> vector<1x16x16xf32>
    %cst_5 = arith.constant dense<0xFF800000> : vector<1x16xf32>
    %12 = vector.multi_reduction <maximumf>, %11, %cst_5 [2] : vector<1x16x16xf32> to vector<1x16xf32>
    %13 = vector.shape_cast %12 : vector<1x16xf32> to vector<1x16x1xf32>
    %14 = vector.broadcast %13 : vector<1x16x1xf32> to vector<1x16x16xf32>
    %15 = arith.subf %11, %14 : vector<1x16x16xf32>
    %16 = math.exp %15 : vector<1x16x16xf32>
    %cst_6 = arith.constant dense<0.000000e+00> : vector<1x16xf32>
    %17 = vector.multi_reduction <add>, %16, %cst_6 [2] : vector<1x16x16xf32> to vector<1x16xf32>
    %18 = vector.shape_cast %17 : vector<1x16xf32> to vector<1x16x1xf32>
    %19 = tpu.reciprocal %18 {approx = true} : vector<1x16x1xf32> -> vector<1x16x1xf32>
    %20 = vector.broadcast %19 : vector<1x16x1xf32> to vector<1x16x16xf32>
    %21 = arith.mulf %16, %20 : vector<1x16x16xf32>
    %22 = arith.truncf %21 : vector<1x16x16xf32> to vector<1x16x16xbf16>
    %cst_7 = arith.constant dense<0.000000e+00> : vector<1x16x8xf32>
    %23 = tpu.matmul %22, %10, %cst_7 {dimension_numbers = #tpu.dot_dimension_numbers<[2], [1], [1], [2], [0, 0, 0, 1, 1, 2], [0], [0]>} : vector<1x16x16xbf16>, vector<1x16x8xbf16>, vector<1x16x8xf32> -> vector<1x16x8xf32>
    %24 = arith.truncf %23 : vector<1x16x8xf32> to vector<1x16x8xbf16>
    %25 = vector.shape_cast %24 : vector<1x16x8xbf16> to vector<16x8xbf16>
    %c0_8 = arith.constant 0 : index
    %c0_9 = arith.constant 0 : index
    %c0_10 = arith.constant 0 : index
    %26 = vector.load %arg3[%c0_8, %c0_9, %c0_10] : memref<8x8x64xbf16, #tpu.memory_space<vmem>>, vector<1x8x64xbf16>
    %27 = vector.shape_cast %26 : vector<1x8x64xbf16> to vector<8x64xbf16>
    %cst_11 = arith.constant dense<0.000000e+00> : vector<16x64xf32>
    %28 = tpu.matmul %25, %27, %cst_11 {dimension_numbers = #tpu.dot_dimension_numbers<[1], [0], [0], [1], [0, 0, 1, 1], [], []>} : vector<16x8xbf16>, vector<8x64xbf16>, vector<16x64xf32> -> vector<16x64xf32>
    %29 = arith.addf %4, %28 : vector<16x64xf32>
    %30 = vector.extract_strided_slice %3 {offsets = [0, 8], sizes = [16, 8], strides = [1, 1]} : vector<16x192xbf16> to vector<16x8xbf16>
    %31 = vector.shape_cast %30 : vector<16x8xbf16> to vector<1x16x8xbf16>
    %32 = vector.extract_strided_slice %3 {offsets = [0, 72], sizes = [16, 8], strides = [1, 1]} : vector<16x192xbf16> to vector<16x8xbf16>
    %33 = vector.shape_cast %32 : vector<16x8xbf16> to vector<1x16x8xbf16>
    %34 = vector.extract_strided_slice %3 {offsets = [0, 136], sizes = [16, 8], strides = [1, 1]} : vector<16x192xbf16> to vector<16x8xbf16>
    %35 = vector.shape_cast %34 : vector<16x8xbf16> to vector<1x16x8xbf16>
    %cst_12 = arith.constant dense<0.000000e+00> : vector<1x16x16xf32>
    %36 = tpu.matmul %31, %33, %cst_12 {dimension_numbers = #tpu.dot_dimension_numbers<[2], [2], [1], [1], [0, 0, 0, 1, 1, 1], [0], [0]>} : vector<1x16x8xbf16>, vector<1x16x8xbf16>, vector<1x16x16xf32> -> vector<1x16x16xf32>
    %cst_13 = arith.constant dense<0xFF800000> : vector<1x16xf32>
    %37 = vector.multi_reduction <maximumf>, %36, %cst_13 [2] : vector<1x16x16xf32> to vector<1x16xf32>
    %38 = vector.shape_cast %37 : vector<1x16xf32> to vector<1x16x1xf32>
    %39 = vector.broadcast %38 : vector<1x16x1xf32> to vector<1x16x16xf32>
    %40 = arith.subf %36, %39 : vector<1x16x16xf32>
    %41 = math.exp %40 : vector<1x16x16xf32>
    %cst_14 = arith.constant dense<0.000000e+00> : vector<1x16xf32>
    %42 = vector.multi_reduction <add>, %41, %cst_14 [2] : vector<1x16x16xf32> to vector<1x16xf32>
    %43 = vector.shape_cast %42 : vector<1x16xf32> to vector<1x16x1xf32>
    %44 = tpu.reciprocal %43 {approx = true} : vector<1x16x1xf32> -> vector<1x16x1xf32>
    %45 = vector.broadcast %44 : vector<1x16x1xf32> to vector<1x16x16xf32>
    %46 = arith.mulf %41, %45 : vector<1x16x16xf32>
    %47 = arith.truncf %46 : vector<1x16x16xf32> to vector<1x16x16xbf16>
    %cst_15 = arith.constant dense<0.000000e+00> : vector<1x16x8xf32>
    %48 = tpu.matmul %47, %35, %cst_15 {dimension_numbers = #tpu.dot_dimension_numbers<[2], [1], [1], [2], [0, 0, 0, 1, 1, 2], [0], [0]>} : vector<1x16x16xbf16>, vector<1x16x8xbf16>, vector<1x16x8xf32> -> vector<1x16x8xf32>
    %49 = arith.truncf %48 : vector<1x16x8xf32> to vector<1x16x8xbf16>
    %50 = vector.shape_cast %49 : vector<1x16x8xbf16> to vector<16x8xbf16>
    %c1 = arith.constant 1 : index
    %c0_16 = arith.constant 0 : index
    %c0_17 = arith.constant 0 : index
    %51 = vector.load %arg3[%c1, %c0_16, %c0_17] : memref<8x8x64xbf16, #tpu.memory_space<vmem>>, vector<1x8x64xbf16>
    %52 = vector.shape_cast %51 : vector<1x8x64xbf16> to vector<8x64xbf16>
    %cst_18 = arith.constant dense<0.000000e+00> : vector<16x64xf32>
    %53 = tpu.matmul %50, %52, %cst_18 {dimension_numbers = #tpu.dot_dimension_numbers<[1], [0], [0], [1], [0, 0, 1, 1], [], []>} : vector<16x8xbf16>, vector<8x64xbf16>, vector<16x64xf32> -> vector<16x64xf32>
    %54 = arith.addf %29, %53 : vector<16x64xf32>
    %55 = vector.extract_strided_slice %3 {offsets = [0, 16], sizes = [16, 8], strides = [1, 1]} : vector<16x192xbf16> to vector<16x8xbf16>
    %56 = vector.shape_cast %55 : vector<16x8xbf16> to vector<1x16x8xbf16>
    %57 = vector.extract_strided_slice %3 {offsets = [0, 80], sizes = [16, 8], strides = [1, 1]} : vector<16x192xbf16> to vector<16x8xbf16>
    %58 = vector.shape_cast %57 : vector<16x8xbf16> to vector<1x16x8xbf16>
    %59 = vector.extract_strided_slice %3 {offsets = [0, 144], sizes = [16, 8], strides = [1, 1]} : vector<16x192xbf16> to vector<16x8xbf16>
    %60 = vector.shape_cast %59 : vector<16x8xbf16> to vector<1x16x8xbf16>
    %cst_19 = arith.constant dense<0.000000e+00> : vector<1x16x16xf32>
    %61 = tpu.matmul %56, %58, %cst_19 {dimension_numbers = #tpu.dot_dimension_numbers<[2], [2], [1], [1], [0, 0, 0, 1, 1, 1], [0], [0]>} : vector<1x16x8xbf16>, vector<1x16x8xbf16>, vector<1x16x16xf32> -> vector<1x16x16xf32>
    %cst_20 = arith.constant dense<0xFF800000> : vector<1x16xf32>
    %62 = vector.multi_reduction <maximumf>, %61, %cst_20 [2] : vector<1x16x16xf32> to vector<1x16xf32>
    %63 = vector.shape_cast %62 : vector<1x16xf32> to vector<1x16x1xf32>
    %64 = vector.broadcast %63 : vector<1x16x1xf32> to vector<1x16x16xf32>
    %65 = arith.subf %61, %64 : vector<1x16x16xf32>
    %66 = math.exp %65 : vector<1x16x16xf32>
    %cst_21 = arith.constant dense<0.000000e+00> : vector<1x16xf32>
    %67 = vector.multi_reduction <add>, %66, %cst_21 [2] : vector<1x16x16xf32> to vector<1x16xf32>
    %68 = vector.shape_cast %67 : vector<1x16xf32> to vector<1x16x1xf32>
    %69 = tpu.reciprocal %68 {approx = true} : vector<1x16x1xf32> -> vector<1x16x1xf32>
    %70 = vector.broadcast %69 : vector<1x16x1xf32> to vector<1x16x16xf32>
    %71 = arith.mulf %66, %70 : vector<1x16x16xf32>
    %72 = arith.truncf %71 : vector<1x16x16xf32> to vector<1x16x16xbf16>
    %cst_22 = arith.constant dense<0.000000e+00> : vector<1x16x8xf32>
    %73 = tpu.matmul %72, %60, %cst_22 {dimension_numbers = #tpu.dot_dimension_numbers<[2], [1], [1], [2], [0, 0, 0, 1, 1, 2], [0], [0]>} : vector<1x16x16xbf16>, vector<1x16x8xbf16>, vector<1x16x8xf32> -> vector<1x16x8xf32>
    %74 = arith.truncf %73 : vector<1x16x8xf32> to vector<1x16x8xbf16>
    %75 = vector.shape_cast %74 : vector<1x16x8xbf16> to vector<16x8xbf16>
    %c2 = arith.constant 2 : index
    %c0_23 = arith.constant 0 : index
    %c0_24 = arith.constant 0 : index
    %76 = vector.load %arg3[%c2, %c0_23, %c0_24] : memref<8x8x64xbf16, #tpu.memory_space<vmem>>, vector<1x8x64xbf16>
    %77 = vector.shape_cast %76 : vector<1x8x64xbf16> to vector<8x64xbf16>
    %cst_25 = arith.constant dense<0.000000e+00> : vector<16x64xf32>
    %78 = tpu.matmul %75, %77, %cst_25 {dimension_numbers = #tpu.dot_dimension_numbers<[1], [0], [0], [1], [0, 0, 1, 1], [], []>} : vector<16x8xbf16>, vector<8x64xbf16>, vector<16x64xf32> -> vector<16x64xf32>
    %79 = arith.addf %54, %78 : vector<16x64xf32>
    %80 = vector.extract_strided_slice %3 {offsets = [0, 24], sizes = [16, 8], strides = [1, 1]} : vector<16x192xbf16> to vector<16x8xbf16>
    %81 = vector.shape_cast %80 : vector<16x8xbf16> to vector<1x16x8xbf16>
    %82 = vector.extract_strided_slice %3 {offsets = [0, 88], sizes = [16, 8], strides = [1, 1]} : vector<16x192xbf16> to vector<16x8xbf16>
    %83 = vector.shape_cast %82 : vector<16x8xbf16> to vector<1x16x8xbf16>
    %84 = vector.extract_strided_slice %3 {offsets = [0, 152], sizes = [16, 8], strides = [1, 1]} : vector<16x192xbf16> to vector<16x8xbf16>
    %85 = vector.shape_cast %84 : vector<16x8xbf16> to vector<1x16x8xbf16>
    %cst_26 = arith.constant dense<0.000000e+00> : vector<1x16x16xf32>
    %86 = tpu.matmul %81, %83, %cst_26 {dimension_numbers = #tpu.dot_dimension_numbers<[2], [2], [1], [1], [0, 0, 0, 1, 1, 1], [0], [0]>} : vector<1x16x8xbf16>, vector<1x16x8xbf16>, vector<1x16x16xf32> -> vector<1x16x16xf32>
    %cst_27 = arith.constant dense<0xFF800000> : vector<1x16xf32>
    %87 = vector.multi_reduction <maximumf>, %86, %cst_27 [2] : vector<1x16x16xf32> to vector<1x16xf32>
    %88 = vector.shape_cast %87 : vector<1x16xf32> to vector<1x16x1xf32>
    %89 = vector.broadcast %88 : vector<1x16x1xf32> to vector<1x16x16xf32>
    %90 = arith.subf %86, %89 : vector<1x16x16xf32>
    %91 = math.exp %90 : vector<1x16x16xf32>
    %cst_28 = arith.constant dense<0.000000e+00> : vector<1x16xf32>
    %92 = vector.multi_reduction <add>, %91, %cst_28 [2] : vector<1x16x16xf32> to vector<1x16xf32>
    %93 = vector.shape_cast %92 : vector<1x16xf32> to vector<1x16x1xf32>
    %94 = tpu.reciprocal %93 {approx = true} : vector<1x16x1xf32> -> vector<1x16x1xf32>
    %95 = vector.broadcast %94 : vector<1x16x1xf32> to vector<1x16x16xf32>
    %96 = arith.mulf %91, %95 : vector<1x16x16xf32>
    %97 = arith.truncf %96 : vector<1x16x16xf32> to vector<1x16x16xbf16>
    %cst_29 = arith.constant dense<0.000000e+00> : vector<1x16x8xf32>
    %98 = tpu.matmul %97, %85, %cst_29 {dimension_numbers = #tpu.dot_dimension_numbers<[2], [1], [1], [2], [0, 0, 0, 1, 1, 2], [0], [0]>} : vector<1x16x16xbf16>, vector<1x16x8xbf16>, vector<1x16x8xf32> -> vector<1x16x8xf32>
    %99 = arith.truncf %98 : vector<1x16x8xf32> to vector<1x16x8xbf16>
    %100 = vector.shape_cast %99 : vector<1x16x8xbf16> to vector<16x8xbf16>
    %c3 = arith.constant 3 : index
    %c0_30 = arith.constant 0 : index
    %c0_31 = arith.constant 0 : index
    %101 = vector.load %arg3[%c3, %c0_30, %c0_31] : memref<8x8x64xbf16, #tpu.memory_space<vmem>>, vector<1x8x64xbf16>
    %102 = vector.shape_cast %101 : vector<1x8x64xbf16> to vector<8x64xbf16>
    %cst_32 = arith.constant dense<0.000000e+00> : vector<16x64xf32>
    %103 = tpu.matmul %100, %102, %cst_32 {dimension_numbers = #tpu.dot_dimension_numbers<[1], [0], [0], [1], [0, 0, 1, 1], [], []>} : vector<16x8xbf16>, vector<8x64xbf16>, vector<16x64xf32> -> vector<16x64xf32>
    %104 = arith.addf %79, %103 : vector<16x64xf32>
    %105 = vector.extract_strided_slice %3 {offsets = [0, 32], sizes = [16, 8], strides = [1, 1]} : vector<16x192xbf16> to vector<16x8xbf16>
    %106 = vector.shape_cast %105 : vector<16x8xbf16> to vector<1x16x8xbf16>
    %107 = vector.extract_strided_slice %3 {offsets = [0, 96], sizes = [16, 8], strides = [1, 1]} : vector<16x192xbf16> to vector<16x8xbf16>
    %108 = vector.shape_cast %107 : vector<16x8xbf16> to vector<1x16x8xbf16>
    %109 = vector.extract_strided_slice %3 {offsets = [0, 160], sizes = [16, 8], strides = [1, 1]} : vector<16x192xbf16> to vector<16x8xbf16>
    %110 = vector.shape_cast %109 : vector<16x8xbf16> to vector<1x16x8xbf16>
    %cst_33 = arith.constant dense<0.000000e+00> : vector<1x16x16xf32>
    %111 = tpu.matmul %106, %108, %cst_33 {dimension_numbers = #tpu.dot_dimension_numbers<[2], [2], [1], [1], [0, 0, 0, 1, 1, 1], [0], [0]>} : vector<1x16x8xbf16>, vector<1x16x8xbf16>, vector<1x16x16xf32> -> vector<1x16x16xf32>
    %cst_34 = arith.constant dense<0xFF800000> : vector<1x16xf32>
    %112 = vector.multi_reduction <maximumf>, %111, %cst_34 [2] : vector<1x16x16xf32> to vector<1x16xf32>
    %113 = vector.shape_cast %112 : vector<1x16xf32> to vector<1x16x1xf32>
    %114 = vector.broadcast %113 : vector<1x16x1xf32> to vector<1x16x16xf32>
    %115 = arith.subf %111, %114 : vector<1x16x16xf32>
    %116 = math.exp %115 : vector<1x16x16xf32>
    %cst_35 = arith.constant dense<0.000000e+00> : vector<1x16xf32>
    %117 = vector.multi_reduction <add>, %116, %cst_35 [2] : vector<1x16x16xf32> to vector<1x16xf32>
    %118 = vector.shape_cast %117 : vector<1x16xf32> to vector<1x16x1xf32>
    %119 = tpu.reciprocal %118 {approx = true} : vector<1x16x1xf32> -> vector<1x16x1xf32>
    %120 = vector.broadcast %119 : vector<1x16x1xf32> to vector<1x16x16xf32>
    %121 = arith.mulf %116, %120 : vector<1x16x16xf32>
    %122 = arith.truncf %121 : vector<1x16x16xf32> to vector<1x16x16xbf16>
    %cst_36 = arith.constant dense<0.000000e+00> : vector<1x16x8xf32>
    %123 = tpu.matmul %122, %110, %cst_36 {dimension_numbers = #tpu.dot_dimension_numbers<[2], [1], [1], [2], [0, 0, 0, 1, 1, 2], [0], [0]>} : vector<1x16x16xbf16>, vector<1x16x8xbf16>, vector<1x16x8xf32> -> vector<1x16x8xf32>
    %124 = arith.truncf %123 : vector<1x16x8xf32> to vector<1x16x8xbf16>
    %125 = vector.shape_cast %124 : vector<1x16x8xbf16> to vector<16x8xbf16>
    %c4 = arith.constant 4 : index
    %c0_37 = arith.constant 0 : index
    %c0_38 = arith.constant 0 : index
    %126 = vector.load %arg3[%c4, %c0_37, %c0_38] : memref<8x8x64xbf16, #tpu.memory_space<vmem>>, vector<1x8x64xbf16>
    %127 = vector.shape_cast %126 : vector<1x8x64xbf16> to vector<8x64xbf16>
    %cst_39 = arith.constant dense<0.000000e+00> : vector<16x64xf32>
    %128 = tpu.matmul %125, %127, %cst_39 {dimension_numbers = #tpu.dot_dimension_numbers<[1], [0], [0], [1], [0, 0, 1, 1], [], []>} : vector<16x8xbf16>, vector<8x64xbf16>, vector<16x64xf32> -> vector<16x64xf32>
    %129 = arith.addf %104, %128 : vector<16x64xf32>
    %130 = vector.extract_strided_slice %3 {offsets = [0, 40], sizes = [16, 8], strides = [1, 1]} : vector<16x192xbf16> to vector<16x8xbf16>
    %131 = vector.shape_cast %130 : vector<16x8xbf16> to vector<1x16x8xbf16>
    %132 = vector.extract_strided_slice %3 {offsets = [0, 104], sizes = [16, 8], strides = [1, 1]} : vector<16x192xbf16> to vector<16x8xbf16>
    %133 = vector.shape_cast %132 : vector<16x8xbf16> to vector<1x16x8xbf16>
    %134 = vector.extract_strided_slice %3 {offsets = [0, 168], sizes = [16, 8], strides = [1, 1]} : vector<16x192xbf16> to vector<16x8xbf16>
    %135 = vector.shape_cast %134 : vector<16x8xbf16> to vector<1x16x8xbf16>
    %cst_40 = arith.constant dense<0.000000e+00> : vector<1x16x16xf32>
    %136 = tpu.matmul %131, %133, %cst_40 {dimension_numbers = #tpu.dot_dimension_numbers<[2], [2], [1], [1], [0, 0, 0, 1, 1, 1], [0], [0]>} : vector<1x16x8xbf16>, vector<1x16x8xbf16>, vector<1x16x16xf32> -> vector<1x16x16xf32>
    %cst_41 = arith.constant dense<0xFF800000> : vector<1x16xf32>
    %137 = vector.multi_reduction <maximumf>, %136, %cst_41 [2] : vector<1x16x16xf32> to vector<1x16xf32>
    %138 = vector.shape_cast %137 : vector<1x16xf32> to vector<1x16x1xf32>
    %139 = vector.broadcast %138 : vector<1x16x1xf32> to vector<1x16x16xf32>
    %140 = arith.subf %136, %139 : vector<1x16x16xf32>
    %141 = math.exp %140 : vector<1x16x16xf32>
    %cst_42 = arith.constant dense<0.000000e+00> : vector<1x16xf32>
    %142 = vector.multi_reduction <add>, %141, %cst_42 [2] : vector<1x16x16xf32> to vector<1x16xf32>
    %143 = vector.shape_cast %142 : vector<1x16xf32> to vector<1x16x1xf32>
    %144 = tpu.reciprocal %143 {approx = true} : vector<1x16x1xf32> -> vector<1x16x1xf32>
    %145 = vector.broadcast %144 : vector<1x16x1xf32> to vector<1x16x16xf32>
    %146 = arith.mulf %141, %145 : vector<1x16x16xf32>
    %147 = arith.truncf %146 : vector<1x16x16xf32> to vector<1x16x16xbf16>
    %cst_43 = arith.constant dense<0.000000e+00> : vector<1x16x8xf32>
    %148 = tpu.matmul %147, %135, %cst_43 {dimension_numbers = #tpu.dot_dimension_numbers<[2], [1], [1], [2], [0, 0, 0, 1, 1, 2], [0], [0]>} : vector<1x16x16xbf16>, vector<1x16x8xbf16>, vector<1x16x8xf32> -> vector<1x16x8xf32>
    %149 = arith.truncf %148 : vector<1x16x8xf32> to vector<1x16x8xbf16>
    %150 = vector.shape_cast %149 : vector<1x16x8xbf16> to vector<16x8xbf16>
    %c5 = arith.constant 5 : index
    %c0_44 = arith.constant 0 : index
    %c0_45 = arith.constant 0 : index
    %151 = vector.load %arg3[%c5, %c0_44, %c0_45] : memref<8x8x64xbf16, #tpu.memory_space<vmem>>, vector<1x8x64xbf16>
    %152 = vector.shape_cast %151 : vector<1x8x64xbf16> to vector<8x64xbf16>
    %cst_46 = arith.constant dense<0.000000e+00> : vector<16x64xf32>
    %153 = tpu.matmul %150, %152, %cst_46 {dimension_numbers = #tpu.dot_dimension_numbers<[1], [0], [0], [1], [0, 0, 1, 1], [], []>} : vector<16x8xbf16>, vector<8x64xbf16>, vector<16x64xf32> -> vector<16x64xf32>
    %154 = arith.addf %129, %153 : vector<16x64xf32>
    %155 = vector.extract_strided_slice %3 {offsets = [0, 48], sizes = [16, 8], strides = [1, 1]} : vector<16x192xbf16> to vector<16x8xbf16>
    %156 = vector.shape_cast %155 : vector<16x8xbf16> to vector<1x16x8xbf16>
    %157 = vector.extract_strided_slice %3 {offsets = [0, 112], sizes = [16, 8], strides = [1, 1]} : vector<16x192xbf16> to vector<16x8xbf16>
    %158 = vector.shape_cast %157 : vector<16x8xbf16> to vector<1x16x8xbf16>
    %159 = vector.extract_strided_slice %3 {offsets = [0, 176], sizes = [16, 8], strides = [1, 1]} : vector<16x192xbf16> to vector<16x8xbf16>
    %160 = vector.shape_cast %159 : vector<16x8xbf16> to vector<1x16x8xbf16>
    %cst_47 = arith.constant dense<0.000000e+00> : vector<1x16x16xf32>
    %161 = tpu.matmul %156, %158, %cst_47 {dimension_numbers = #tpu.dot_dimension_numbers<[2], [2], [1], [1], [0, 0, 0, 1, 1, 1], [0], [0]>} : vector<1x16x8xbf16>, vector<1x16x8xbf16>, vector<1x16x16xf32> -> vector<1x16x16xf32>
    %cst_48 = arith.constant dense<0xFF800000> : vector<1x16xf32>
    %162 = vector.multi_reduction <maximumf>, %161, %cst_48 [2] : vector<1x16x16xf32> to vector<1x16xf32>
    %163 = vector.shape_cast %162 : vector<1x16xf32> to vector<1x16x1xf32>
    %164 = vector.broadcast %163 : vector<1x16x1xf32> to vector<1x16x16xf32>
    %165 = arith.subf %161, %164 : vector<1x16x16xf32>
    %166 = math.exp %165 : vector<1x16x16xf32>
    %cst_49 = arith.constant dense<0.000000e+00> : vector<1x16xf32>
    %167 = vector.multi_reduction <add>, %166, %cst_49 [2] : vector<1x16x16xf32> to vector<1x16xf32>
    %168 = vector.shape_cast %167 : vector<1x16xf32> to vector<1x16x1xf32>
    %169 = tpu.reciprocal %168 {approx = true} : vector<1x16x1xf32> -> vector<1x16x1xf32>
    %170 = vector.broadcast %169 : vector<1x16x1xf32> to vector<1x16x16xf32>
    %171 = arith.mulf %166, %170 : vector<1x16x16xf32>
    %172 = arith.truncf %171 : vector<1x16x16xf32> to vector<1x16x16xbf16>
    %cst_50 = arith.constant dense<0.000000e+00> : vector<1x16x8xf32>
    %173 = tpu.matmul %172, %160, %cst_50 {dimension_numbers = #tpu.dot_dimension_numbers<[2], [1], [1], [2], [0, 0, 0, 1, 1, 2], [0], [0]>} : vector<1x16x16xbf16>, vector<1x16x8xbf16>, vector<1x16x8xf32> -> vector<1x16x8xf32>
    %174 = arith.truncf %173 : vector<1x16x8xf32> to vector<1x16x8xbf16>
    %175 = vector.shape_cast %174 : vector<1x16x8xbf16> to vector<16x8xbf16>
    %c6 = arith.constant 6 : index
    %c0_51 = arith.constant 0 : index
    %c0_52 = arith.constant 0 : index
    %176 = vector.load %arg3[%c6, %c0_51, %c0_52] : memref<8x8x64xbf16, #tpu.memory_space<vmem>>, vector<1x8x64xbf16>
    %177 = vector.shape_cast %176 : vector<1x8x64xbf16> to vector<8x64xbf16>
    %cst_53 = arith.constant dense<0.000000e+00> : vector<16x64xf32>
    %178 = tpu.matmul %175, %177, %cst_53 {dimension_numbers = #tpu.dot_dimension_numbers<[1], [0], [0], [1], [0, 0, 1, 1], [], []>} : vector<16x8xbf16>, vector<8x64xbf16>, vector<16x64xf32> -> vector<16x64xf32>
    %179 = arith.addf %154, %178 : vector<16x64xf32>
    %180 = vector.extract_strided_slice %3 {offsets = [0, 56], sizes = [16, 8], strides = [1, 1]} : vector<16x192xbf16> to vector<16x8xbf16>
    %181 = vector.shape_cast %180 : vector<16x8xbf16> to vector<1x16x8xbf16>
    %182 = vector.extract_strided_slice %3 {offsets = [0, 120], sizes = [16, 8], strides = [1, 1]} : vector<16x192xbf16> to vector<16x8xbf16>
    %183 = vector.shape_cast %182 : vector<16x8xbf16> to vector<1x16x8xbf16>
    %184 = vector.extract_strided_slice %3 {offsets = [0, 184], sizes = [16, 8], strides = [1, 1]} : vector<16x192xbf16> to vector<16x8xbf16>
    %185 = vector.shape_cast %184 : vector<16x8xbf16> to vector<1x16x8xbf16>
    %cst_54 = arith.constant dense<0.000000e+00> : vector<1x16x16xf32>
    %186 = tpu.matmul %181, %183, %cst_54 {dimension_numbers = #tpu.dot_dimension_numbers<[2], [2], [1], [1], [0, 0, 0, 1, 1, 1], [0], [0]>} : vector<1x16x8xbf16>, vector<1x16x8xbf16>, vector<1x16x16xf32> -> vector<1x16x16xf32>
    %cst_55 = arith.constant dense<0xFF800000> : vector<1x16xf32>
    %187 = vector.multi_reduction <maximumf>, %186, %cst_55 [2] : vector<1x16x16xf32> to vector<1x16xf32>
    %188 = vector.shape_cast %187 : vector<1x16xf32> to vector<1x16x1xf32>
    %189 = vector.broadcast %188 : vector<1x16x1xf32> to vector<1x16x16xf32>
    %190 = arith.subf %186, %189 : vector<1x16x16xf32>
    %191 = math.exp %190 : vector<1x16x16xf32>
    %cst_56 = arith.constant dense<0.000000e+00> : vector<1x16xf32>
    %192 = vector.multi_reduction <add>, %191, %cst_56 [2] : vector<1x16x16xf32> to vector<1x16xf32>
    %193 = vector.shape_cast %192 : vector<1x16xf32> to vector<1x16x1xf32>
    %194 = tpu.reciprocal %193 {approx = true} : vector<1x16x1xf32> -> vector<1x16x1xf32>
    %195 = vector.broadcast %194 : vector<1x16x1xf32> to vector<1x16x16xf32>
    %196 = arith.mulf %191, %195 : vector<1x16x16xf32>
    %197 = arith.truncf %196 : vector<1x16x16xf32> to vector<1x16x16xbf16>
    %cst_57 = arith.constant dense<0.000000e+00> : vector<1x16x8xf32>
    %198 = tpu.matmul %197, %185, %cst_57 {dimension_numbers = #tpu.dot_dimension_numbers<[2], [1], [1], [2], [0, 0, 0, 1, 1, 2], [0], [0]>} : vector<1x16x16xbf16>, vector<1x16x8xbf16>, vector<1x16x8xf32> -> vector<1x16x8xf32>
    %199 = arith.truncf %198 : vector<1x16x8xf32> to vector<1x16x8xbf16>
    %200 = vector.shape_cast %199 : vector<1x16x8xbf16> to vector<16x8xbf16>
    %c7 = arith.constant 7 : index
    %c0_58 = arith.constant 0 : index
    %c0_59 = arith.constant 0 : index
    %201 = vector.load %arg3[%c7, %c0_58, %c0_59] : memref<8x8x64xbf16, #tpu.memory_space<vmem>>, vector<1x8x64xbf16>
    %202 = vector.shape_cast %201 : vector<1x8x64xbf16> to vector<8x64xbf16>
    %cst_60 = arith.constant dense<0.000000e+00> : vector<16x64xf32>
    %203 = tpu.matmul %200, %202, %cst_60 {dimension_numbers = #tpu.dot_dimension_numbers<[1], [0], [0], [1], [0, 0, 1, 1], [], []>} : vector<16x8xbf16>, vector<8x64xbf16>, vector<16x64xf32> -> vector<16x64xf32>
    %204 = arith.addf %179, %203 : vector<16x64xf32>
    %c0_61 = arith.constant 0 : index
    %c0_62 = arith.constant 0 : index
    %205 = vector.load %arg4[%c0_61, %c0_62] : memref<1x64xf32, #tpu.memory_space<vmem>>, vector<1x64xf32>
    %206 = vector.broadcast %205 : vector<1x64xf32> to vector<16x64xf32>
    %207 = arith.addf %204, %206 : vector<16x64xf32>
    %c0_63 = arith.constant 0 : index
    %c0_64 = arith.constant 0 : index
    %208 = vector.load %arg5[%c0_63, %c0_64] : memref<16x64xf32, #tpu.memory_space<vmem>>, vector<16x64xf32>
    tpu.vector_store %arg5[%c0_63, %c0_64], %207 {strides = array<i32>} : memref<16x64xf32, #tpu.memory_space<vmem>>, vector<16x64xf32>,
    return
  }
  func.func @transform_0(%arg0: i32) -> (i32, i32) {
    %c0_i32 = arith.constant 0 : i32
    %c0_i32_0 = arith.constant 0 : i32
    return %arg0, %c0_i32 : i32, i32
  }
  func.func @transform_1(%arg0: i32) -> (i32, i32) {
    %c0_i32 = arith.constant 0 : i32
    %c0_i32_0 = arith.constant 0 : i32
    %c0_i32_1 = arith.constant 0 : i32
    return %c0_i32, %c0_i32_0 : i32, i32
  }
  func.func @transform_2(%arg0: i32) -> (i32, i32, i32) {
    %c0_i32 = arith.constant 0 : i32
    %c0_i32_0 = arith.constant 0 : i32
    %c0_i32_1 = arith.constant 0 : i32
    %c0_i32_2 = arith.constant 0 : i32
    return %c0_i32, %c0_i32_0, %c0_i32_1 : i32, i32, i32
  }
  func.func @transform_3(%arg0: i32) -> (i32, i32) {
    %c0_i32 = arith.constant 0 : i32
    %c0_i32_0 = arith.constant 0 : i32
    %c0_i32_1 = arith.constant 0 : i32
    return %c0_i32, %c0_i32_0 : i32, i32
  }
  func.func @transform_4(%arg0: i32) -> (i32, i32) {
    %c0_i32 = arith.constant 0 : i32
    %c0_i32_0 = arith.constant 0 : i32
    return %arg0, %c0_i32 : i32, i32
  }
}

</mosaic_0001>

<llo_original>
// kernel: tpu_custom_call.1
$region0: #{tpu_custom_call.1}
  #allocation0 [shape = 'u32[]', space=smem, size = 0x4, offset = 0x4, fixed_abs, tag = 'smem constant byte address 0x4 - core index']
  #allocation1 [shape = 'u32[72,128]{1,0:T(1,128)}', space=vmem, size = 0x9000, scoped, tag = 'internal scratch']
  %s0 = inlined_call_operand.hbm [shape: bf16[32,64], index: 0, kind: input, shape index: {}]
  %s1 = inlined_call_operand.hbm [shape: bf16[64,192], index: 1, kind: input, shape index: {}]
  %s2 = inlined_call_operand.hbm [shape: bf16[8,8,64], index: 2, kind: input, shape index: {}]
  %s3 = inlined_call_operand.vmem [shape: f32[1,64], index: 3, kind: input, shape index: {}]
  %s4 = inlined_call_operand.hbm [shape: f32[32,64], index: 4, kind: output, shape index: {}]
  %s5 = sld [smem:[#allocation0]]
  $region61: #{tpu_custom_call.1} parent=0
    _
  %s7 = ssub.s32 1, %s5
  %s8 = scalar_select 0, %s7, %s5
  $region1: #{tpu_custom_call.1} parent=0
    #allocation2 [shape = 'u8[8192]{0}', space=vmem, size = 0x2000, scoped, tag = 'input window, operand 0']
    #allocation3 [shape = 's32[2]{0}', space=sflag, size = 0x8, scoped, tag = 'scoped memory for tpu_custom_call.1']
    #allocation4 [shape = 's32[2]{0}', space=sflag, size = 0x8, scoped, tag = 'scoped memory for tpu_custom_call.1']
    #allocation5 [shape = 'u8[32768]{0}', space=vmem, size = 0x8000, scoped, tag = 'input window, operand 1, single buffered']
    #allocation6 [shape = 's32[1]{0}', space=sflag, size = 0x4, scoped, tag = 'scoped memory for tpu_custom_call.1']
    #allocation7 [shape = 'u8[16384]{0}', space=vmem, size = 0x4000, scoped, tag = 'input window, operand 2, single buffered']
    #allocation8 [shape = 'u8[16384]{0}', space=vmem, size = 0x4000, scoped, tag = 'output window, operand 0']
    %9 = vsyncpa [#allocation3], 0
    %s10 = scalar_lea.sflag [#allocation3], 1
    %11 = vsyncpa %s10, 0
    %12 = vsyncpa [#allocation6], 0
    %13 = vsyncpa [#allocation4], 0
    %s14 = scalar_lea.sflag [#allocation4], 1
    %15 = vsyncpa %s14, 0
    loop: start=0, step=1, limit=4
    $region2: #{tpu_custom_call.1} parent=1 // loop_pre_header
      _
    $region3: #{tpu_custom_call.1} parent=1 // loop_header
      %s17 = sphi 0, %s21
      %p18 = scmp.ge.s32.totalorder %s17, 4
      %s27 = sphi 0, %s29
      %s30 = sphi 0, %s27
      %s31 = sphi 0, %s30
      %s47 = sphi 0, %s31
      %s51 = sphi 0, %s51
      %s53 = sphi 0, %s51
      %s54 = sphi 0, %s53
      %s68 = sphi 0, %s54
      %s72 = sphi 0, %s72
      %s74 = sphi 0, %s72
      %s75 = sphi 0, %s74
      %s89 = sphi 0, %s75
      %s93 = sphi 0, %s93
      %s95 = sphi 0, %s93
      %s96 = sphi 0, %s95
      %s110 = sphi 0, %s96
      %s116 = sphi 0, %s118
      %s119 = sphi 0, %s116
      %s120 = sphi 0, %s119
      %s136 = sphi 0, %s120
    $region4: #{tpu_custom_call.1} parent=1 // loop_header_branch
      %20 = sbr.rel (%p18) target = $region8
    $region5: #{tpu_custom_call.1} parent=1 // loop_body
      %s22 = ssub.s32 %s17, 1
      %s23 = ssub.s32 %s17, 2
      %s24 = sadd.s32 %s17, 1
      %s25 = ssub.s32 %s17, %s24
      %p26 = scmp.eq.s32.totalorder %s25, 0
      %s28 = sadd.s32 %s27, 1
      %s29 = scalar_select %p26, %s27, %s28
      %p32 = pneg %p26
      %p33 = scmp.eq.s32.totalorder %s17, 1
      %p34 = por %p32, %p33
      %p35 = scmp.ne.s32.totalorder %s27, %s30
      %p36 = scmp.eq.s32.totalorder %s17, 0
      %p37 = por %p35, %p36
      %p38 = scmp.ne.s32.totalorder %s27, %s30
      %p39 = scmp.eq.s32.totalorder %s22, 1
      %p40 = por %p38, %p39
      %p41 = scmp.ne.s32.totalorder %s30, %s31
      %p42 = scmp.eq.s32.totalorder %s22, 0
      %p43 = por %p41, %p42
      %p44 = scmp.ne.s32.totalorder %s30, %s31
      %p45 = scmp.eq.s32.totalorder %s23, 1
      %p46 = por %p44, %p45
      %p48 = scmp.ne.s32.totalorder %s31, %s47
      %p49 = scmp.eq.s32.totalorder %s23, 0
      %p50 = por %p48, %p49
      %s52 = sadd.s32 %s51, 1
      %p55 = scmp.eq.s32.totalorder %s17, 1
      %p56 = scmp.ne.s32.totalorder %s51, %s53
      %p57 = scmp.eq.s32.totalorder %s17, 0
      %p58 = por %p56, %p57
      %p59 = scmp.ne.s32.totalorder %s51, %s53
      %p60 = scmp.eq.s32.totalorder %s22, 1
      %p61 = por %p59, %p60
      %p62 = scmp.ne.s32.totalorder %s53, %s54
      %p63 = scmp.eq.s32.totalorder %s22, 0
      %p64 = por %p62, %p63
      %p65 = scmp.ne.s32.totalorder %s53, %s54
      %p66 = scmp.eq.s32.totalorder %s23, 1
      %p67 = por %p65, %p66
      %p69 = scmp.ne.s32.totalorder %s54, %s68
      %p70 = scmp.eq.s32.totalorder %s23, 0
      %p71 = por %p69, %p70
      %s73 = sadd.s32 %s72, 1
      %p76 = scmp.eq.s32.totalorder %s17, 1
      %p77 = scmp.ne.s32.totalorder %s72, %s74
      %p78 = scmp.eq.s32.totalorder %s17, 0
      %p79 = por %p77, %p78
      %p80 = scmp.ne.s32.totalorder %s72, %s74
      %p81 = scmp.eq.s32.totalorder %s22, 1
      %p82 = por %p80, %p81
      %p83 = scmp.ne.s32.totalorder %s74, %s75
      %p84 = scmp.eq.s32.totalorder %s22, 0
      %p85 = por %p83, %p84
      %p86 = scmp.ne.s32.totalorder %s74, %s75
      %p87 = scmp.eq.s32.totalorder %s23, 1
      %p88 = por %p86, %p87
      %p90 = scmp.ne.s32.totalorder %s75, %s89
      %p91 = scmp.eq.s32.totalorder %s23, 0
      %p92 = por %p90, %p91
      %s94 = sadd.s32 %s93, 1
      %p97 = scmp.eq.s32.totalorder %s17, 1
      %p98 = scmp.ne.s32.totalorder %s93, %s95
      %p99 = scmp.eq.s32.totalorder %s17, 0
      %p100 = por %p98, %p99
      %p101 = scmp.ne.s32.totalorder %s93, %s95
      %p102 = scmp.eq.s32.totalorder %s22, 1
      %p103 = por %p101, %p102
      %p104 = scmp.ne.s32.totalorder %s95, %s96
      %p105 = scmp.eq.s32.totalorder %s22, 0
      %p106 = por %p104, %p105
      %p107 = scmp.ne.s32.totalorder %s95, %s96
      %p108 = scmp.eq.s32.totalorder %s23, 1
      %p109 = por %p107, %p108
      %p111 = scmp.ne.s32.totalorder %s96, %s110
      %p112 = scmp.eq.s32.totalorder %s23, 0
      %p113 = por %p111, %p112
      %s114 = ssub.s32 %s17, %s24
      %p115 = scmp.eq.s32.totalorder %s114, 0
      %s117 = sadd.s32 %s116, 1
      %s118 = scalar_select %p115, %s116, %s117
      %p121 = pneg %p115
      %p122 = scmp.eq.s32.totalorder %s17, 1
      %p123 = por %p121, %p122
      %p124 = scmp.ne.s32.totalorder %s116, %s119
      %p125 = scmp.eq.s32.totalorder %s17, 0
      %p126 = por %p124, %p125
      %p127 = scmp.ne.s32.totalorder %s116, %s119
      %p128 = scmp.eq.s32.totalorder %s22, 1
      %p129 = por %p127, %p128
      %p130 = scmp.ne.s32.totalorder %s119, %s120
      %p131 = scmp.eq.s32.totalorder %s22, 0
      %p132 = por %p130, %p131
      %p133 = scmp.ne.s32.totalorder %s119, %s120
      %p134 = scmp.eq.s32.totalorder %s23, 1
      %p135 = por %p133, %p134
      %p137 = scmp.ne.s32.totalorder %s120, %s136
      %p138 = scmp.eq.s32.totalorder %s23, 0
      %p139 = por %p137, %p138
      %p140 = scmp.le.s32.totalorder 1, %s17
      %p141 = scmp.lt.s32.totalorder %s17, 3
      %p142 = pnand %p140, %p141
      %p143 = pneg %p142
      // Predicated region
      $region9: #{tpu_custom_call.1} parent=5 // pred_check
        _
      $region10: #{tpu_custom_call.1} parent=5 // pred_check_branch
        %145 = sbr.rel (%p142) target = $region12
      $region11: #{tpu_custom_call.1} parent=5 // pred_region
        %s146 = ssub.s32 %s17, 1
        // Predicated region
        $region13: #{tpu_custom_call.1} parent=11 // pred_check
          %p147 = pneg %p64
        $region14: #{tpu_custom_call.1} parent=11 // pred_check_branch
          %149 = sbr.rel (%p147) target = $region16
        $region15: #{tpu_custom_call.1} parent=11 // pred_region
          %151 = vsyncadd [#allocation6], 0
          %s152 = sshll.u32 %s1, 4
          %s153 = int_to_ptr.hbm [resolvable:$true] %s152
          %s154 = sshll.u32 [#allocation5], 4
          %s155 = int_to_ptr.vmem [resolvable:$true] %s154
          %160 = dma.hbm_to_vmem [thread:$0]  %s153, 1024, %s155, [#allocation6], 128, 128, 8
        $region16: #{tpu_custom_call.1} parent=11 // pred_fallthru
          _
        // Predicated region
        $region17: #{tpu_custom_call.1} parent=11 // pred_check
          %p161 = pneg %p85
        $region18: #{tpu_custom_call.1} parent=11 // pred_check_branch
          %163 = sbr.rel (%p161) target = $region20
        $region19: #{tpu_custom_call.1} parent=11 // pred_region
          %165 = vsyncadd [#allocation6], 0
          %s166 = sshll.u32 %s2, 4
          %s167 = int_to_ptr.hbm [resolvable:$true] %s166
          %s168 = sshll.u32 [#allocation7], 4
          %s169 = int_to_ptr.vmem [resolvable:$true] %s168
          %174 = dma.hbm_to_vmem [thread:$0]  %s167, 512, %s169, [#allocation6], 64, 64, 4
        $region20: #{tpu_custom_call.1} parent=11 // pred_fallthru
          _
        // Predicated region
        $region21: #{tpu_custom_call.1} parent=11 // pred_check
          %p175 = pneg %p106
        $region22: #{tpu_custom_call.1} parent=11 // pred_check_branch
          %177 = sbr.rel (%p175) target = $region24
        $region23: #{tpu_custom_call.1} parent=11 // pred_region
          _
        $region24: #{tpu_custom_call.1} parent=11 // pred_fallthru
          _
      $region12: #{tpu_custom_call.1} parent=5 // pred_fallthru
        _
      %p178 = scmp.lt.s32.totalorder %s17, 2
      // Predicated region
      $region25: #{tpu_custom_call.1} parent=5 // pred_check
        %p179 = pneg %p178
      $region26: #{tpu_custom_call.1} parent=5 // pred_check_branch
        %181 = sbr.rel (%p179) target = $region28
      $region27: #{tpu_custom_call.1} parent=5 // pred_region
        // Predicated region
        $region29: #{tpu_custom_call.1} parent=27 // pred_check
          %p182 = pneg %p37
        $region30: #{tpu_custom_call.1} parent=27 // pred_check_branch
          %184 = sbr.rel (%p182) target = $region32
        $region31: #{tpu_custom_call.1} parent=27 // pred_region
          %s185 = sand.u32 %s27, 1
          %s186 = scalar_lea.sflag [#allocation3], %s185
          %s187 = sand.u32 %s27, 1
          %s188 = smul.addr %s187, 8
          %s189 = scalar_lea.vmem [#allocation2], %s188
          %s190 = smul.u32 2, %s17
          %192 = vsyncadd %s186, 0
          %s193 = smul.addr %s190, 4
          %s194 = scalar_lea.hbm %s0, %s193
          %s195 = sshll.u32 %s194, 4
          %s196 = int_to_ptr.hbm [resolvable:$true] %s195
          %s197 = sshll.u32 %s189, 4
          %s198 = int_to_ptr.vmem [resolvable:$true] %s197
          %203 = dma.hbm_to_vmem [thread:$0]  %s196, 128, %s198, %s186, 64, 64, 4
        $region32: #{tpu_custom_call.1} parent=27 // pred_fallthru
          _
      $region28: #{tpu_custom_call.1} parent=5 // pred_fallthru
        _
      %p204 = scmp.le.s32.totalorder 1, %s17
      %p205 = scmp.lt.s32.totalorder %s17, 3
      %p206 = pnand %p204, %p205
      %p207 = pneg %p206
      // Predicated region
      $region33: #{tpu_custom_call.1} parent=5 // pred_check
        _
      $region34: #{tpu_custom_call.1} parent=5 // pred_check_branch
        %209 = sbr.rel (%p206) target = $region36
      $region35: #{tpu_custom_call.1} parent=5 // pred_region
        %s210 = ssub.s32 %s17, 1
        %s211 = sand.u32 %s30, 1
        %s212 = scalar_lea.sflag [#allocation3], %s211
        %s213 = sand.u32 %s30, 1
        %s214 = smul.addr %s213, 8
        %s215 = scalar_lea.vmem [#allocation2], %s214
        // Predicated region
        $region37: #{tpu_custom_call.1} parent=35 // pred_check
          %p216 = pneg %p43
        $region38: #{tpu_custom_call.1} parent=35 // pred_check_branch
          %218 = sbr.rel (%p216) target = $region40
        $region39: #{tpu_custom_call.1} parent=35 // pred_region
          %220 = dma.done %s212, 128
        $region40: #{tpu_custom_call.1} parent=35 // pred_fallthru
          _
        // Predicated region
        $region41: #{tpu_custom_call.1} parent=35 // pred_check
          %p221 = pneg %p64
        $region42: #{tpu_custom_call.1} parent=35 // pred_check_branch
          %223 = sbr.rel (%p221) target = $region44
        $region43: #{tpu_custom_call.1} parent=35 // pred_region
          %225 = dma.done [#allocation6], 1024
        $region44: #{tpu_custom_call.1} parent=35 // pred_fallthru
          _
        // Predicated region
        $region45: #{tpu_custom_call.1} parent=35 // pred_check
          %p226 = pneg %p85
        $region46: #{tpu_custom_call.1} parent=35 // pred_check_branch
          %228 = sbr.rel (%p226) target = $region48
        $region47: #{tpu_custom_call.1} parent=35 // pred_region
          %230 = dma.done [#allocation6], 512
        $region48: #{tpu_custom_call.1} parent=35 // pred_fallthru
          _
        %s231 = sand.u32 %s30, 1
        %s232 = scalar_lea.sflag [#allocation3], %s231
        %s233 = sand.u32 %s30, 1
        %s234 = smul.addr %s233, 8
        %s235 = scalar_lea.vmem [#allocation2], %s234
        %p236 = pneg %p43
        %p237 = pneg %p40
        %p238 = pneg %p64
        %p239 = pneg %p61
        %p240 = pneg %p85
        %p241 = pneg %p82
        %p242 = pneg %p106
        %p243 = pneg %p103
        %p244 = pneg %p132
        %p245 = pneg %p129
        %s246 = sand.u32 %s119, 1
        %s247 = scalar_lea.sflag [#allocation4], %s246
        %s248 = sand.u32 %s119, 1
        %s249 = smul.addr %s248, 16
        %s250 = scalar_lea.vmem [#allocation8], %s249
        %s251 = smul.u32 2, %s22
        %s252 = smul.u32 2, %s22
        %v254 = vld [vmem:[%s215] sm:$0xf]
        %v255 = vld [vmem:[%s215 + $0x4] sm:$0xf]
        %v256 = vld [vmem:[#allocation5] sm:$0xff]
        %v257 = vld [vmem:[#allocation5 + $0x8] sm:$0xff]
        %v258 = vld [vmem:[#allocation5 + $0x10] sm:$0xff]
        %v259 = vld [vmem:[#allocation5 + $0x18] sm:$0xff]
        %v260 = vld [vmem:[#allocation5 + $0x20] sm:$0xff]
        %v261 = vld [vmem:[#allocation5 + $0x28] sm:$0xff]
        %v262 = vld [vmem:[#allocation5 + $0x30] sm:$0xff]
        %v263 = vld [vmem:[#allocation5 + $0x38] sm:$0xff]
        %v266 = vunpack.c.l.b16 %v254
        %v267 = vunpack.c.l.b16 %v255
        %v268 = vpack.c.b16 %v267, %v266
        %v277 = vunpack.c.l.b16 %v256
        %v278 = vunpack.c.h.b16 %v256
        %v279 = vunpack.c.l.b16 %v257
        %v280 = vunpack.c.h.b16 %v257
        %v281 = vunpack.c.l.b16 %v258
        %v282 = vunpack.c.h.b16 %v258
        %v283 = vunpack.c.l.b16 %v259
        %v284 = vunpack.c.h.b16 %v259
        %v285 = vunpack.c.l.b16 %v260
        %v286 = vunpack.c.h.b16 %v260
        %v287 = vunpack.c.l.b16 %v261
        %v288 = vunpack.c.h.b16 %v261
        %v289 = vunpack.c.l.b16 %v262
        %v290 = vunpack.c.h.b16 %v262
        %v291 = vunpack.c.l.b16 %v263
        %v292 = vunpack.c.h.b16 %v263
        %v293 = vpack.c.b16 %v279, %v277
        %v294 = vpack.c.b16 %v280, %v278
        %v295 = vpack.c.b16 %v283, %v281
        %v296 = vpack.c.b16 %v284, %v282
        %v297 = vpack.c.b16 %v287, %v285
        %v298 = vpack.c.b16 %v288, %v286
        %v299 = vpack.c.b16 %v291, %v289
        %v300 = vpack.c.b16 %v292, %v290
        %vm309 = vcmask 523264
        %v311 = vsel %vm309, %v268, 0
        %313 = vmatpush.bf16.msra.mxu0 0
        %314 = vmatpush.bf16.msra.mxu0 0
        %315 = vmatpush.bf16.msra.mxu0 0
        %316 = vmatpush.bf16.msra.mxu0 0
        %317 = vmatpush.bf16.msra.mxu0 %v299
        %318 = vmatpush.bf16.msra.mxu0 %v297
        %319 = vmatpush.bf16.msra.mxu0 %v295
        %320 = vmatpush.bf16.msra.mxu0 %v293
        %321 = vmatmul.bf16.gmra.mxu0 %v311
        %v322 = vpop.f32.mrf.mxu0
        %v323 = vadd.f32 0.0, %v322
        %v324 = vpop.f32.mrf.mxu0
        %v325 = vadd.f32 0.0, %v324
        %326 = vdwg.mxu0
        %327 = vmatpush.bf16.msra.mxu0 0
        %328 = vmatpush.bf16.msra.mxu0 0
        %329 = vmatpush.bf16.msra.mxu0 0
        %330 = vmatpush.bf16.msra.mxu0 0
        %331 = vmatpush.bf16.msra.mxu0 %v300
        %332 = vmatpush.bf16.msra.mxu0 %v298
        %333 = vmatpush.bf16.msra.mxu0 %v296
        %334 = vmatpush.bf16.msra.mxu0 %v294
        %335 = vmatmul.bf16.gmra.mxu0 %v311
        %v336 = vpop.f32.mrf.mxu0
        %v337 = vadd.f32 0.0, %v336
        %v338 = vpop.f32.mrf.mxu0
        %v339 = vadd.f32 0.0, %v338
        %340 = vdwg.mxu0
        %v341 = vpack.c.bf16 %v337, %v323
        %v342 = vpack.c.bf16 %v339, %v325
        %v345 = vrot.slane %v341, 4
        %v346 = vrot.slane %v342, 4
        %v347 = vunpack.c.l.b16 %v341
        %v348 = vunpack.c.l.b16 %v342
        %v349 = vpack.c.b16 %v348, %v347
        %350 = vrot.lane.b32.xlu0 %v349, 64
        %v351 = vpop.permute.xlu0 %350
        %vm352 = vcmask 64512
        %v354 = vsel %vm352, %v349, 0
        %v357 = vsel %vm352, %v351, 0
        %359 = vmatpush.bf16.xpose.msra.mxu0 0
        %360 = vmatpush.bf16.xpose.msra.mxu0 0
        %361 = vmatpush.bf16.xpose.msra.mxu0 0
        %362 = vmatpush.bf16.xpose.msra.mxu0 0
        %363 = vmatpush.bf16.xpose.msra.mxu0 0
        %364 = vmatpush.bf16.xpose.msra.mxu0 0
        %365 = vmatpush.bf16.xpose.msra.mxu0 0
        %366 = vmatpush.bf16.xpose.msra.mxu0 %v357
        %367 = vmatmul.bf16.gmra.mxu0 %v354
        %v368 = vpop.f32.mrf.mxu0
        %v369 = vadd.f32 0.0, %v368
        %v370 = vpop.f32.mrf.mxu0
        %v371 = vadd.f32 0.0, %v370
        %372 = vdwg.mxu0
        %vm373 = vcmask 130048
        %v374 = vsel %vm373, %v369, -inf
        %375 = vmax.xlane.f32.xlu0 %v374
        %v376 = vpop.xlane.xlu0 %375
        %v377 = vsel %vm373, %v371, -inf
        %378 = vmax.xlane.f32.xlu0 %v377
        %v379 = vpop.xlane.xlu0 %378
        %v380 = vsub.f32 %v369, %v376
        %v381 = vsub.f32 %v371, %v379
        %v382 = vmul.f32 %v380, 1.442695
        %v383 = vpow.pop %v382
        %v384 = vmul.f32 %v381, 1.442695
        %v385 = vpow.pop %v384
        %v386 = vsel %vm373, %v383, 0.0
        %387 = vadd.xlane.f32.xlu0 %v386
        %v388 = vpop.xlane.xlu0 %387
        %v389 = vsel %vm373, %v385, 0.0
        %390 = vadd.xlane.f32.xlu0 %v389
        %v391 = vpop.xlane.xlu0 %390
        %v392 = vrcp.pop %v388
        %v393 = vrcp.pop %v391
        %v394 = vmul.f32 %v383, %v392
        %v395 = vmul.f32 %v385, %v393
        %v396 = vpack.c.bf16 %v394, %v394
        %v397 = vpack.c.bf16 %v395, %v395
        %v400 = vunpack.c.l.b16 %v396
        %v401 = vunpack.c.l.b16 %v397
        %v402 = vpack.c.b16 %v401, %v400
        %v403 = vunpack.c.l.b16 %v345
        %v404 = vunpack.c.l.b16 %v346
        %v405 = vpack.c.b16 %v404, %v403
        %v408 = vsel %vm373, %v402, 0
        %410 = vmatpush.bf16.msra.mxu0 0
        %411 = vmatpush.bf16.msra.mxu0 0
        %412 = vmatpush.bf16.msra.mxu0 0
        %413 = vmatpush.bf16.msra.mxu0 0
        %414 = vmatpush.bf16.msra.mxu0 0
        %415 = vmatpush.bf16.msra.mxu0 0
        %416 = vmatpush.bf16.msra.mxu0 0
        %417 = vmatpush.bf16.msra.mxu0 %v405
        %418 = vmatmul.bf16.gmra.mxu0 %v408
        %v419 = vpop.f32.mrf.mxu0
        %v420 = vadd.f32 0.0, %v419
        %v421 = vpop.f32.mrf.mxu0
        %v422 = vadd.f32 0.0, %v421
        %423 = vdwg.mxu0
        %v424 = vpack.c.bf16 %v420, %v420
        %v425 = vpack.c.bf16 %v422, %v422
        %v426 = vld [vmem:[#allocation7] sm:$0xf]
        %427 = vrot.lane.b32.xlu0 %v341, 120
        %v428 = vpop.permute.xlu0 %427
        %429 = vrot.lane.b32.xlu0 %v342, 120
        %v430 = vpop.permute.xlu0 %429
        %v431 = vrot.slane %v428, 4
        %v432 = vrot.slane %v430, 4
        %433 = vrot.lane.b32.xlu0 %v349, 120
        %v434 = vpop.permute.xlu0 %433
        %435 = vrot.lane.b32.xlu0 %v349, 56
        %v436 = vpop.permute.xlu0 %435
        %v438 = vsel %vm352, %v434, 0
        %v441 = vsel %vm352, %v436, 0
        %443 = vmatpush.bf16.xpose.msra.mxu0 0
        %444 = vmatpush.bf16.xpose.msra.mxu0 0
        %445 = vmatpush.bf16.xpose.msra.mxu0 0
        %446 = vmatpush.bf16.xpose.msra.mxu0 0
        %447 = vmatpush.bf16.xpose.msra.mxu0 0
        %448 = vmatpush.bf16.xpose.msra.mxu0 0
        %449 = vmatpush.bf16.xpose.msra.mxu0 0
        %450 = vmatpush.bf16.xpose.msra.mxu0 %v441
        %451 = vmatmul.bf16.gmra.mxu0 %v438
        %v452 = vpop.f32.mrf.mxu0
        %v453 = vadd.f32 0.0, %v452
        %v454 = vpop.f32.mrf.mxu0
        %v455 = vadd.f32 0.0, %v454
        %456 = vdwg.mxu0
        %v457 = vsel %vm373, %v453, -inf
        %458 = vmax.xlane.f32.xlu0 %v457
        %v459 = vpop.xlane.xlu0 %458
        %v460 = vsel %vm373, %v455, -inf
        %461 = vmax.xlane.f32.xlu0 %v460
        %v462 = vpop.xlane.xlu0 %461
        %v463 = vsub.f32 %v453, %v459
        %v464 = vsub.f32 %v455, %v462
        %v465 = vmul.f32 %v463, 1.442695
        %v466 = vpow.pop %v465
        %v467 = vmul.f32 %v464, 1.442695
        %v468 = vpow.pop %v467
        %v469 = vsel %vm373, %v466, 0.0
        %470 = vadd.xlane.f32.xlu0 %v469
        %v471 = vpop.xlane.xlu0 %470
        %v472 = vsel %vm373, %v468, 0.0
        %473 = vadd.xlane.f32.xlu0 %v472
        %v474 = vpop.xlane.xlu0 %473
        %v475 = vrcp.pop %v471
        %v476 = vrcp.pop %v474
        %v477 = vmul.f32 %v466, %v475
        %v478 = vmul.f32 %v468, %v476
        %v479 = vpack.c.bf16 %v477, %v477
        %v480 = vpack.c.bf16 %v478, %v478
        %v483 = vunpack.c.l.b16 %v479
        %v484 = vunpack.c.l.b16 %v480
        %v485 = vpack.c.b16 %v484, %v483
        %v486 = vunpack.c.l.b16 %v431
        %v487 = vunpack.c.l.b16 %v432
        %v488 = vpack.c.b16 %v487, %v486
        %v491 = vsel %vm373, %v485, 0
        %493 = vmatpush.bf16.msra.mxu0 0
        %494 = vmatpush.bf16.msra.mxu0 0
        %495 = vmatpush.bf16.msra.mxu0 0
        %496 = vmatpush.bf16.msra.mxu0 0
        %497 = vmatpush.bf16.msra.mxu0 0
        %498 = vmatpush.bf16.msra.mxu0 0
        %499 = vmatpush.bf16.msra.mxu0 0
        %500 = vmatpush.bf16.msra.mxu0 %v488
        %501 = vmatmul.bf16.gmra.mxu0 %v491
        %v502 = vpop.f32.mrf.mxu0
        %v503 = vadd.f32 0.0, %v502
        %v504 = vpop.f32.mrf.mxu0
        %v505 = vadd.f32 0.0, %v504
        %506 = vdwg.mxu0
        %v507 = vpack.c.bf16 %v503, %v503
        %v508 = vpack.c.bf16 %v505, %v505
        %s509 = scalar_lea.vmem [#allocation7], 4
        %v510 = vld [vmem:[%s509] sm:$0xf]
        %v513 = vunpack.c.l.b16 %v507
        %v514 = vunpack.c.l.b16 %v508
        %v515 = vpack.c.b16 %v514, %v513
        %v517 = vsel %vm352, %v515, 0
        %vm519 = vcmask 1043456
        %v521 = vsel %vm519, %v510, 0
        %523 = vmatpush.bf16.msra.mxu0 0
        %524 = vmatpush.bf16.msra.mxu0 0
        %525 = vmatpush.bf16.msra.mxu0 0
        %526 = vmatpush.bf16.msra.mxu0 0
        %527 = vmatpush.bf16.msra.mxu0 0
        %528 = vmatpush.bf16.msra.mxu0 0
        %529 = vmatpush.bf16.msra.mxu0 0
        %530 = vmatpush.bf16.msra.mxu0 %v521
        %531 = vmatmul.bf16.gmra.mxu0 %v517
        %v532 = vpop.f32.mrf.mxu0
        %v533 = vadd.f32 0.0, %v532
        %v534 = vpop.f32.mrf.mxu0
        %v535 = vadd.f32 0.0, %v534
        %536 = vdwg.mxu0
        %v539 = vunpack.c.l.b16 %v424
        %v540 = vunpack.c.l.b16 %v425
        %v541 = vpack.c.b16 %v540, %v539
        %v543 = vsel %vm352, %v541, 0
        %v546 = vsel %vm519, %v426, 0
        %548 = vmatpush.bf16.msra.mxu0 0
        %549 = vmatpush.bf16.msra.mxu0 0
        %550 = vmatpush.bf16.msra.mxu0 0
        %551 = vmatpush.bf16.msra.mxu0 0
        %552 = vmatpush.bf16.msra.mxu0 0
        %553 = vmatpush.bf16.msra.mxu0 0
        %554 = vmatpush.bf16.msra.mxu0 0
        %555 = vmatpush.bf16.msra.mxu0 %v546
        %556 = vmatmul.bf16.gmra.mxu0 %v543
        %v557 = vpop.f32.mrf.mxu0
        %v558 = vadd.f32 %v533, %v557
        %v559 = vpop.f32.mrf.mxu0
        %v560 = vadd.f32 %v535, %v559
        %561 = vdwg.mxu0
        %562 = vrot.lane.b32.xlu0 %v341, 112
        %v563 = vpop.permute.xlu0 %562
        %564 = vrot.lane.b32.xlu0 %v342, 112
        %v565 = vpop.permute.xlu0 %564
        %v566 = vrot.slane %v563, 4
        %v567 = vrot.slane %v565, 4
        %568 = vrot.lane.b32.xlu0 %v349, 112
        %v569 = vpop.permute.xlu0 %568
        %570 = vrot.lane.b32.xlu0 %v349, 48
        %v571 = vpop.permute.xlu0 %570
        %v573 = vsel %vm352, %v569, 0
        %v576 = vsel %vm352, %v571, 0
        %578 = vmatpush.bf16.xpose.msra.mxu0 0
        %579 = vmatpush.bf16.xpose.msra.mxu0 0
        %580 = vmatpush.bf16.xpose.msra.mxu0 0
        %581 = vmatpush.bf16.xpose.msra.mxu0 0
        %582 = vmatpush.bf16.xpose.msra.mxu0 0
        %583 = vmatpush.bf16.xpose.msra.mxu0 0
        %584 = vmatpush.bf16.xpose.msra.mxu0 0
        %585 = vmatpush.bf16.xpose.msra.mxu0 %v576
        %586 = vmatmul.bf16.gmra.mxu0 %v573
        %v587 = vpop.f32.mrf.mxu0
        %v588 = vadd.f32 0.0, %v587
        %v589 = vpop.f32.mrf.mxu0
        %v590 = vadd.f32 0.0, %v589
        %591 = vdwg.mxu0
        %v592 = vsel %vm373, %v588, -inf
        %593 = vmax.xlane.f32.xlu0 %v592
        %v594 = vpop.xlane.xlu0 %593
        %v595 = vsel %vm373, %v590, -inf
        %596 = vmax.xlane.f32.xlu0 %v595
        %v597 = vpop.xlane.xlu0 %596
        %v598 = vsub.f32 %v588, %v594
        %v599 = vsub.f32 %v590, %v597
        %v600 = vmul.f32 %v598, 1.442695
        %v601 = vpow.pop %v600
        %v602 = vmul.f32 %v599, 1.442695
        %v603 = vpow.pop %v602
        %v604 = vsel %vm373, %v601, 0.0
        %605 = vadd.xlane.f32.xlu0 %v604
        %v606 = vpop.xlane.xlu0 %605
        %v607 = vsel %vm373, %v603, 0.0
        %608 = vadd.xlane.f32.xlu0 %v607
        %v609 = vpop.xlane.xlu0 %608
        %v610 = vrcp.pop %v606
        %v611 = vrcp.pop %v609
        %v612 = vmul.f32 %v601, %v610
        %v613 = vmul.f32 %v603, %v611
        %v614 = vpack.c.bf16 %v612, %v612
        %v615 = vpack.c.bf16 %v613, %v613
        %v618 = vunpack.c.l.b16 %v614
        %v619 = vunpack.c.l.b16 %v615
        %v620 = vpack.c.b16 %v619, %v618
        %v621 = vunpack.c.l.b16 %v566
        %v622 = vunpack.c.l.b16 %v567
        %v623 = vpack.c.b16 %v622, %v621
        %v626 = vsel %vm373, %v620, 0
        %628 = vmatpush.bf16.msra.mxu0 0
        %629 = vmatpush.bf16.msra.mxu0 0
        %630 = vmatpush.bf16.msra.mxu0 0
        %631 = vmatpush.bf16.msra.mxu0 0
        %632 = vmatpush.bf16.msra.mxu0 0
        %633 = vmatpush.bf16.msra.mxu0 0
        %634 = vmatpush.bf16.msra.mxu0 0
        %635 = vmatpush.bf16.msra.mxu0 %v623
        %636 = vmatmul.bf16.gmra.mxu0 %v626
        %v637 = vpop.f32.mrf.mxu0
        %v638 = vadd.f32 0.0, %v637
        %v639 = vpop.f32.mrf.mxu0
        %v640 = vadd.f32 0.0, %v639
        %641 = vdwg.mxu0
        %v642 = vpack.c.bf16 %v638, %v638
        %v643 = vpack.c.bf16 %v640, %v640
        %s644 = scalar_lea.vmem [#allocation7], 8
        %v645 = vld [vmem:[%s644] sm:$0xf]
        %v648 = vunpack.c.l.b16 %v642
        %v649 = vunpack.c.l.b16 %v643
        %v650 = vpack.c.b16 %v649, %v648
        %v652 = vsel %vm352, %v650, 0
        %v655 = vsel %vm519, %v645, 0
        %657 = vmatpush.bf16.msra.mxu0 0
        %658 = vmatpush.bf16.msra.mxu0 0
        %659 = vmatpush.bf16.msra.mxu0 0
        %660 = vmatpush.bf16.msra.mxu0 0
        %661 = vmatpush.bf16.msra.mxu0 0
        %662 = vmatpush.bf16.msra.mxu0 0
        %663 = vmatpush.bf16.msra.mxu0 0
        %664 = vmatpush.bf16.msra.mxu0 %v655
        %665 = vmatmul.bf16.gmra.mxu0 %v652
        %v666 = vpop.f32.mrf.mxu0
        %v667 = vadd.f32 0.0, %v666
        %v668 = vpop.f32.mrf.mxu0
        %v669 = vadd.f32 0.0, %v668
        %670 = vdwg.mxu0
        %v671 = vadd.f32 %v558, %v667
        %v672 = vadd.f32 %v560, %v669
        %673 = vrot.lane.b32.xlu0 %v341, 104
        %v674 = vpop.permute.xlu0 %673
        %675 = vrot.lane.b32.xlu0 %v342, 104
        %v676 = vpop.permute.xlu0 %675
        %v677 = vrot.slane %v674, 4
        %v678 = vrot.slane %v676, 4
        %679 = vrot.lane.b32.xlu0 %v349, 104
        %v680 = vpop.permute.xlu0 %679
        %681 = vrot.lane.b32.xlu0 %v349, 40
        %v682 = vpop.permute.xlu0 %681
        %v684 = vsel %vm352, %v680, 0
        %v687 = vsel %vm352, %v682, 0
        %689 = vmatpush.bf16.xpose.msra.mxu0 0
        %690 = vmatpush.bf16.xpose.msra.mxu0 0
        %691 = vmatpush.bf16.xpose.msra.mxu0 0
        %692 = vmatpush.bf16.xpose.msra.mxu0 0
        %693 = vmatpush.bf16.xpose.msra.mxu0 0
        %694 = vmatpush.bf16.xpose.msra.mxu0 0
        %695 = vmatpush.bf16.xpose.msra.mxu0 0
        %696 = vmatpush.bf16.xpose.msra.mxu0 %v687
        %697 = vmatmul.bf16.gmra.mxu0 %v684
        %v698 = vpop.f32.mrf.mxu0
        %v699 = vadd.f32 0.0, %v698
        %v700 = vpop.f32.mrf.mxu0
        %v701 = vadd.f32 0.0, %v700
        %702 = vdwg.mxu0
        %v703 = vsel %vm373, %v699, -inf
        %704 = vmax.xlane.f32.xlu0 %v703
        %v705 = vpop.xlane.xlu0 %704
        %v706 = vsel %vm373, %v701, -inf
        %707 = vmax.xlane.f32.xlu0 %v706
        %v708 = vpop.xlane.xlu0 %707
        %v709 = vsub.f32 %v699, %v705
        %v710 = vsub.f32 %v701, %v708
        %v711 = vmul.f32 %v709, 1.442695
        %v712 = vpow.pop %v711
        %v713 = vmul.f32 %v710, 1.442695
        %v714 = vpow.pop %v713
        %v715 = vsel %vm373, %v712, 0.0
        %716 = vadd.xlane.f32.xlu0 %v715
        %v717 = vpop.xlane.xlu0 %716
        %v718 = vsel %vm373, %v714, 0.0
        %719 = vadd.xlane.f32.xlu0 %v718
        %v720 = vpop.xlane.xlu0 %719
        %v721 = vrcp.pop %v717
        %v722 = vrcp.pop %v720
        %v723 = vmul.f32 %v712, %v721
        %v724 = vmul.f32 %v714, %v722
        %v725 = vpack.c.bf16 %v723, %v723
        %v726 = vpack.c.bf16 %v724, %v724
        %v729 = vunpack.c.l.b16 %v725
        %v730 = vunpack.c.l.b16 %v726
        %v731 = vpack.c.b16 %v730, %v729
        %v732 = vunpack.c.l.b16 %v677
        %v733 = vunpack.c.l.b16 %v678
        %v734 = vpack.c.b16 %v733, %v732
        %v737 = vsel %vm373, %v731, 0
        %739 = vmatpush.bf16.msra.mxu0 0
        %740 = vmatpush.bf16.msra.mxu0 0
        %741 = vmatpush.bf16.msra.mxu0 0
        %742 = vmatpush.bf16.msra.mxu0 0
        %743 = vmatpush.bf16.msra.mxu0 0
        %744 = vmatpush.bf16.msra.mxu0 0
        %745 = vmatpush.bf16.msra.mxu0 0
        %746 = vmatpush.bf16.msra.mxu0 %v734
        %747 = vmatmul.bf16.gmra.mxu0 %v737
        %v748 = vpop.f32.mrf.mxu0
        %v749 = vadd.f32 0.0, %v748
        %v750 = vpop.f32.mrf.mxu0
        %v751 = vadd.f32 0.0, %v750
        %752 = vdwg.mxu0
        %v753 = vpack.c.bf16 %v749, %v749
        %v754 = vpack.c.bf16 %v751, %v751
        %s755 = scalar_lea.vmem [#allocation7], 12
        %v756 = vld [vmem:[%s755] sm:$0xf]
        %v759 = vunpack.c.l.b16 %v753
        %v760 = vunpack.c.l.b16 %v754
        %v761 = vpack.c.b16 %v760, %v759
        %v763 = vsel %vm352, %v761, 0
        %v766 = vsel %vm519, %v756, 0
        %768 = vmatpush.bf16.msra.mxu0 0
        %769 = vmatpush.bf16.msra.mxu0 0
        %770 = vmatpush.bf16.msra.mxu0 0
        %771 = vmatpush.bf16.msra.mxu0 0
        %772 = vmatpush.bf16.msra.mxu0 0
        %773 = vmatpush.bf16.msra.mxu0 0
        %774 = vmatpush.bf16.msra.mxu0 0
        %775 = vmatpush.bf16.msra.mxu0 %v766
        %776 = vmatmul.bf16.gmra.mxu0 %v763
        %v777 = vpop.f32.mrf.mxu0
        %v778 = vadd.f32 0.0, %v777
        %v779 = vpop.f32.mrf.mxu0
        %v780 = vadd.f32 0.0, %v779
        %781 = vdwg.mxu0
        %v782 = vadd.f32 %v671, %v778
        %v783 = vadd.f32 %v672, %v780
        %784 = vrot.lane.b32.xlu0 %v341, 96
        %v785 = vpop.permute.xlu0 %784
        %786 = vrot.lane.b32.xlu0 %v342, 96
        %v787 = vpop.permute.xlu0 %786
        %v788 = vrot.slane %v785, 4
        %v789 = vrot.slane %v787, 4
        %790 = vrot.lane.b32.xlu0 %v349, 96
        %v791 = vpop.permute.xlu0 %790
        %792 = vrot.lane.b32.xlu0 %v349, 32
        %v793 = vpop.permute.xlu0 %792
        %v795 = vsel %vm352, %v791, 0
        %v798 = vsel %vm352, %v793, 0
        %800 = vmatpush.bf16.xpose.msra.mxu0 0
        %801 = vmatpush.bf16.xpose.msra.mxu0 0
        %802 = vmatpush.bf16.xpose.msra.mxu0 0
        %803 = vmatpush.bf16.xpose.msra.mxu0 0
        %804 = vmatpush.bf16.xpose.msra.mxu0 0
        %805 = vmatpush.bf16.xpose.msra.mxu0 0
        %806 = vmatpush.bf16.xpose.msra.mxu0 0
        %807 = vmatpush.bf16.xpose.msra.mxu0 %v798
        %808 = vmatmul.bf16.gmra.mxu0 %v795
        %v809 = vpop.f32.mrf.mxu0
        %v810 = vadd.f32 0.0, %v809
        %v811 = vpop.f32.mrf.mxu0
        %v812 = vadd.f32 0.0, %v811
        %813 = vdwg.mxu0
        %v814 = vsel %vm373, %v810, -inf
        %815 = vmax.xlane.f32.xlu0 %v814
        %v816 = vpop.xlane.xlu0 %815
        %v817 = vsel %vm373, %v812, -inf
        %818 = vmax.xlane.f32.xlu0 %v817
        %v819 = vpop.xlane.xlu0 %818
        %v820 = vsub.f32 %v810, %v816
        %v821 = vsub.f32 %v812, %v819
        %v822 = vmul.f32 %v820, 1.442695
        %v823 = vpow.pop %v822
        %v824 = vmul.f32 %v821, 1.442695
        %v825 = vpow.pop %v824
        %v826 = vsel %vm373, %v823, 0.0
        %827 = vadd.xlane.f32.xlu0 %v826
        %v828 = vpop.xlane.xlu0 %827
        %v829 = vsel %vm373, %v825, 0.0
        %830 = vadd.xlane.f32.xlu0 %v829
        %v831 = vpop.xlane.xlu0 %830
        %v832 = vrcp.pop %v828
        %v833 = vrcp.pop %v831
        %v834 = vmul.f32 %v823, %v832
        %v835 = vmul.f32 %v825, %v833
        %v836 = vpack.c.bf16 %v834, %v834
        %v837 = vpack.c.bf16 %v835, %v835
        %v840 = vunpack.c.l.b16 %v836
        %v841 = vunpack.c.l.b16 %v837
        %v842 = vpack.c.b16 %v841, %v840
        %v843 = vunpack.c.l.b16 %v788
        %v844 = vunpack.c.l.b16 %v789
        %v845 = vpack.c.b16 %v844, %v843
        %v848 = vsel %vm373, %v842, 0
        %850 = vmatpush.bf16.msra.mxu0 0
        %851 = vmatpush.bf16.msra.mxu0 0
        %852 = vmatpush.bf16.msra.mxu0 0
        %853 = vmatpush.bf16.msra.mxu0 0
        %854 = vmatpush.bf16.msra.mxu0 0
        %855 = vmatpush.bf16.msra.mxu0 0
        %856 = vmatpush.bf16.msra.mxu0 0
        %857 = vmatpush.bf16.msra.mxu0 %v845
        %858 = vmatmul.bf16.gmra.mxu0 %v848
        %v859 = vpop.f32.mrf.mxu0
        %v860 = vadd.f32 0.0, %v859
        %v861 = vpop.f32.mrf.mxu0
        %v862 = vadd.f32 0.0, %v861
        %863 = vdwg.mxu0
        %v864 = vpack.c.bf16 %v860, %v860
        %v865 = vpack.c.bf16 %v862, %v862
        %s866 = scalar_lea.vmem [#allocation7], 16
        %v867 = vld [vmem:[%s866] sm:$0xf]
        %v870 = vunpack.c.l.b16 %v864
        %v871 = vunpack.c.l.b16 %v865
        %v872 = vpack.c.b16 %v871, %v870
        %v874 = vsel %vm352, %v872, 0
        %v877 = vsel %vm519, %v867, 0
        %879 = vmatpush.bf16.msra.mxu0 0
        %880 = vmatpush.bf16.msra.mxu0 0
        %881 = vmatpush.bf16.msra.mxu0 0
        %882 = vmatpush.bf16.msra.mxu0 0
        %883 = vmatpush.bf16.msra.mxu0 0
        %884 = vmatpush.bf16.msra.mxu0 0
        %885 = vmatpush.bf16.msra.mxu0 0
        %886 = vmatpush.bf16.msra.mxu0 %v877
        %887 = vmatmul.bf16.gmra.mxu0 %v874
        %v888 = vpop.f32.mrf.mxu0
        %v889 = vadd.f32 0.0, %v888
        %v890 = vpop.f32.mrf.mxu0
        %v891 = vadd.f32 0.0, %v890
        %892 = vdwg.mxu0
        %v893 = vadd.f32 %v782, %v889
        %v894 = vadd.f32 %v783, %v891
        %895 = vrot.lane.b32.xlu0 %v341, 88
        %v896 = vpop.permute.xlu0 %895
        %897 = vrot.lane.b32.xlu0 %v342, 88
        %v898 = vpop.permute.xlu0 %897
        %v899 = vrot.slane %v896, 4
        %v900 = vrot.slane %v898, 4
        %901 = vrot.lane.b32.xlu0 %v349, 88
        %v902 = vpop.permute.xlu0 %901
        %903 = vrot.lane.b32.xlu0 %v349, 24
        %v904 = vpop.permute.xlu0 %903
        %v906 = vsel %vm352, %v902, 0
        %v909 = vsel %vm352, %v904, 0
        %911 = vmatpush.bf16.xpose.msra.mxu0 0
        %912 = vmatpush.bf16.xpose.msra.mxu0 0
        %913 = vmatpush.bf16.xpose.msra.mxu0 0
        %914 = vmatpush.bf16.xpose.msra.mxu0 0
        %915 = vmatpush.bf16.xpose.msra.mxu0 0
        %916 = vmatpush.bf16.xpose.msra.mxu0 0
        %917 = vmatpush.bf16.xpose.msra.mxu0 0
        %918 = vmatpush.bf16.xpose.msra.mxu0 %v909
        %919 = vmatmul.bf16.gmra.mxu0 %v906
        %v920 = vpop.f32.mrf.mxu0
        %v921 = vadd.f32 0.0, %v920
        %v922 = vpop.f32.mrf.mxu0
        %v923 = vadd.f32 0.0, %v922
        %924 = vdwg.mxu0
        %v925 = vsel %vm373, %v921, -inf
        %926 = vmax.xlane.f32.xlu0 %v925
        %v927 = vpop.xlane.xlu0 %926
        %v928 = vsel %vm373, %v923, -inf
        %929 = vmax.xlane.f32.xlu0 %v928
        %v930 = vpop.xlane.xlu0 %929
        %v931 = vsub.f32 %v921, %v927
        %v932 = vsub.f32 %v923, %v930
        %v933 = vmul.f32 %v931, 1.442695
        %v934 = vpow.pop %v933
        %v935 = vmul.f32 %v932, 1.442695
        %v936 = vpow.pop %v935
        %v937 = vsel %vm373, %v934, 0.0
        %938 = vadd.xlane.f32.xlu0 %v937
        %v939 = vpop.xlane.xlu0 %938
        %v940 = vsel %vm373, %v936, 0.0
        %941 = vadd.xlane.f32.xlu0 %v940
        %v942 = vpop.xlane.xlu0 %941
        %v943 = vrcp.pop %v939
        %v944 = vrcp.pop %v942
        %v945 = vmul.f32 %v934, %v943
        %v946 = vmul.f32 %v936, %v944
        %v947 = vpack.c.bf16 %v945, %v945
        %v948 = vpack.c.bf16 %v946, %v946
        %v951 = vunpack.c.l.b16 %v947
        %v952 = vunpack.c.l.b16 %v948
        %v953 = vpack.c.b16 %v952, %v951
        %v954 = vunpack.c.l.b16 %v899
        %v955 = vunpack.c.l.b16 %v900
        %v956 = vpack.c.b16 %v955, %v954
        %v959 = vsel %vm373, %v953, 0
        %961 = vmatpush.bf16.msra.mxu0 0
        %962 = vmatpush.bf16.msra.mxu0 0
        %963 = vmatpush.bf16.msra.mxu0 0
        %964 = vmatpush.bf16.msra.mxu0 0
        %965 = vmatpush.bf16.msra.mxu0 0
        %966 = vmatpush.bf16.msra.mxu0 0
        %967 = vmatpush.bf16.msra.mxu0 0
        %968 = vmatpush.bf16.msra.mxu0 %v956
        %969 = vmatmul.bf16.gmra.mxu0 %v959
        %v970 = vpop.f32.mrf.mxu0
        %v971 = vadd.f32 0.0, %v970
        %v972 = vpop.f32.mrf.mxu0
        %v973 = vadd.f32 0.0, %v972
        %974 = vdwg.mxu0
        %v975 = vpack.c.bf16 %v971, %v971
        %v976 = vpack.c.bf16 %v973, %v973
        %s977 = scalar_lea.vmem [#allocation7], 20
        %v978 = vld [vmem:[%s977] sm:$0xf]
        %v981 = vunpack.c.l.b16 %v975
        %v982 = vunpack.c.l.b16 %v976
        %v983 = vpack.c.b16 %v982, %v981
        %v985 = vsel %vm352, %v983, 0
        %v988 = vsel %vm519, %v978, 0
        %990 = vmatpush.bf16.msra.mxu0 0
        %991 = vmatpush.bf16.msra.mxu0 0
        %992 = vmatpush.bf16.msra.mxu0 0
        %993 = vmatpush.bf16.msra.mxu0 0
        %994 = vmatpush.bf16.msra.mxu0 0
        %995 = vmatpush.bf16.msra.mxu0 0
        %996 = vmatpush.bf16.msra.mxu0 0
        %997 = vmatpush.bf16.msra.mxu0 %v988
        %998 = vmatmul.bf16.gmra.mxu0 %v985
        %v999 = vpop.f32.mrf.mxu0
        %v1000 = vadd.f32 0.0, %v999
        %v1001 = vpop.f32.mrf.mxu0
        %v1002 = vadd.f32 0.0, %v1001
        %1003 = vdwg.mxu0
        %v1004 = vadd.f32 %v893, %v1000
        %v1005 = vadd.f32 %v894, %v1002
        %1006 = vrot.lane.b32.xlu0 %v341, 80
        %v1007 = vpop.permute.xlu0 %1006
        %1008 = vrot.lane.b32.xlu0 %v342, 80
        %v1009 = vpop.permute.xlu0 %1008
        %v1010 = vrot.slane %v1007, 4
        %v1011 = vrot.slane %v1009, 4
        %1012 = vrot.lane.b32.xlu0 %v349, 80
        %v1013 = vpop.permute.xlu0 %1012
        %1014 = vrot.lane.b32.xlu0 %v349, 16
        %v1015 = vpop.permute.xlu0 %1014
        %v1017 = vsel %vm352, %v1013, 0
        %v1020 = vsel %vm352, %v1015, 0
        %1022 = vmatpush.bf16.xpose.msra.mxu0 0
        %1023 = vmatpush.bf16.xpose.msra.mxu0 0
        %1024 = vmatpush.bf16.xpose.msra.mxu0 0
        %1025 = vmatpush.bf16.xpose.msra.mxu0 0
        %1026 = vmatpush.bf16.xpose.msra.mxu0 0
        %1027 = vmatpush.bf16.xpose.msra.mxu0 0
        %1028 = vmatpush.bf16.xpose.msra.mxu0 0
        %1029 = vmatpush.bf16.xpose.msra.mxu0 %v1020
        %1030 = vmatmul.bf16.gmra.mxu0 %v1017
        %v1031 = vpop.f32.mrf.mxu0
        %v1032 = vadd.f32 0.0, %v1031
        %v1033 = vpop.f32.mrf.mxu0
        %v1034 = vadd.f32 0.0, %v1033
        %1035 = vdwg.mxu0
        %v1036 = vsel %vm373, %v1032, -inf
        %1037 = vmax.xlane.f32.xlu0 %v1036
        %v1038 = vpop.xlane.xlu0 %1037
        %v1039 = vsel %vm373, %v1034, -inf
        %1040 = vmax.xlane.f32.xlu0 %v1039
        %v1041 = vpop.xlane.xlu0 %1040
        %v1042 = vsub.f32 %v1032, %v1038
        %v1043 = vsub.f32 %v1034, %v1041
        %v1044 = vmul.f32 %v1042, 1.442695
        %v1045 = vpow.pop %v1044
        %v1046 = vmul.f32 %v1043, 1.442695
        %v1047 = vpow.pop %v1046
        %v1048 = vsel %vm373, %v1045, 0.0
        %1049 = vadd.xlane.f32.xlu0 %v1048
        %v1050 = vpop.xlane.xlu0 %1049
        %v1051 = vsel %vm373, %v1047, 0.0
        %1052 = vadd.xlane.f32.xlu0 %v1051
        %v1053 = vpop.xlane.xlu0 %1052
        %v1054 = vrcp.pop %v1050
        %v1055 = vrcp.pop %v1053
        %v1056 = vmul.f32 %v1045, %v1054
        %v1057 = vmul.f32 %v1047, %v1055
        %v1058 = vpack.c.bf16 %v1056, %v1056
        %v1059 = vpack.c.bf16 %v1057, %v1057
        %v1062 = vunpack.c.l.b16 %v1058
        %v1063 = vunpack.c.l.b16 %v1059
        %v1064 = vpack.c.b16 %v1063, %v1062
        %v1065 = vunpack.c.l.b16 %v1010
        %v1066 = vunpack.c.l.b16 %v1011
        %v1067 = vpack.c.b16 %v1066, %v1065
        %v1070 = vsel %vm373, %v1064, 0
        %1072 = vmatpush.bf16.msra.mxu0 0
        %1073 = vmatpush.bf16.msra.mxu0 0
        %1074 = vmatpush.bf16.msra.mxu0 0
        %1075 = vmatpush.bf16.msra.mxu0 0
        %1076 = vmatpush.bf16.msra.mxu0 0
        %1077 = vmatpush.bf16.msra.mxu0 0
        %1078 = vmatpush.bf16.msra.mxu0 0
        %1079 = vmatpush.bf16.msra.mxu0 %v1067
        %1080 = vmatmul.bf16.gmra.mxu0 %v1070
        %v1081 = vpop.f32.mrf.mxu0
        %v1082 = vadd.f32 0.0, %v1081
        %v1083 = vpop.f32.mrf.mxu0
        %v1084 = vadd.f32 0.0, %v1083
        %1085 = vdwg.mxu0
        %v1086 = vpack.c.bf16 %v1082, %v1082
        %v1087 = vpack.c.bf16 %v1084, %v1084
        %s1088 = scalar_lea.vmem [#allocation7], 24
        %v1089 = vld [vmem:[%s1088] sm:$0xf]
        %v1092 = vunpack.c.l.b16 %v1086
        %v1093 = vunpack.c.l.b16 %v1087
        %v1094 = vpack.c.b16 %v1093, %v1092
        %v1096 = vsel %vm352, %v1094, 0
        %v1099 = vsel %vm519, %v1089, 0
        %1101 = vmatpush.bf16.msra.mxu0 0
        %1102 = vmatpush.bf16.msra.mxu0 0
        %1103 = vmatpush.bf16.msra.mxu0 0
        %1104 = vmatpush.bf16.msra.mxu0 0
        %1105 = vmatpush.bf16.msra.mxu0 0
        %1106 = vmatpush.bf16.msra.mxu0 0
        %1107 = vmatpush.bf16.msra.mxu0 0
        %1108 = vmatpush.bf16.msra.mxu0 %v1099
        %1109 = vmatmul.bf16.gmra.mxu0 %v1096
        %v1110 = vpop.f32.mrf.mxu0
        %v1111 = vadd.f32 0.0, %v1110
        %v1112 = vpop.f32.mrf.mxu0
        %v1113 = vadd.f32 0.0, %v1112
        %1114 = vdwg.mxu0
        %v1115 = vadd.f32 %v1004, %v1111
        %v1116 = vadd.f32 %v1005, %v1113
        %1117 = vrot.lane.b32.xlu0 %v341, 72
        %v1118 = vpop.permute.xlu0 %1117
        %1119 = vrot.lane.b32.xlu0 %v342, 72
        %v1120 = vpop.permute.xlu0 %1119
        %v1121 = vrot.slane %v1118, 4
        %v1122 = vrot.slane %v1120, 4
        %1123 = vrot.lane.b32.xlu0 %v349, 72
        %v1124 = vpop.permute.xlu0 %1123
        %1125 = vrot.lane.b32.xlu0 %v349, 8
        %v1126 = vpop.permute.xlu0 %1125
        %v1128 = vsel %vm352, %v1124, 0
        %v1131 = vsel %vm352, %v1126, 0
        %1133 = vmatpush.bf16.xpose.msra.mxu0 0
        %1134 = vmatpush.bf16.xpose.msra.mxu0 0
        %1135 = vmatpush.bf16.xpose.msra.mxu0 0
        %1136 = vmatpush.bf16.xpose.msra.mxu0 0
        %1137 = vmatpush.bf16.xpose.msra.mxu0 0
        %1138 = vmatpush.bf16.xpose.msra.mxu0 0
        %1139 = vmatpush.bf16.xpose.msra.mxu0 0
        %1140 = vmatpush.bf16.xpose.msra.mxu0 %v1131
        %1141 = vmatmul.bf16.gmra.mxu0 %v1128
        %v1142 = vpop.f32.mrf.mxu0
        %v1143 = vadd.f32 0.0, %v1142
        %v1144 = vpop.f32.mrf.mxu0
        %v1145 = vadd.f32 0.0, %v1144
        %1146 = vdwg.mxu0
        %v1147 = vsel %vm373, %v1143, -inf
        %1148 = vmax.xlane.f32.xlu0 %v1147
        %v1149 = vpop.xlane.xlu0 %1148
        %v1150 = vsel %vm373, %v1145, -inf
        %1151 = vmax.xlane.f32.xlu0 %v1150
        %v1152 = vpop.xlane.xlu0 %1151
        %v1153 = vsub.f32 %v1143, %v1149
        %v1154 = vsub.f32 %v1145, %v1152
        %v1155 = vmul.f32 %v1153, 1.442695
        %v1156 = vpow.pop %v1155
        %v1157 = vmul.f32 %v1154, 1.442695
        %v1158 = vpow.pop %v1157
        %v1159 = vsel %vm373, %v1156, 0.0
        %1160 = vadd.xlane.f32.xlu0 %v1159
        %v1161 = vpop.xlane.xlu0 %1160
        %v1162 = vsel %vm373, %v1158, 0.0
        %1163 = vadd.xlane.f32.xlu0 %v1162
        %v1164 = vpop.xlane.xlu0 %1163
        %v1165 = vrcp.pop %v1161
        %v1166 = vrcp.pop %v1164
        %v1167 = vmul.f32 %v1156, %v1165
        %v1168 = vmul.f32 %v1158, %v1166
        %v1169 = vpack.c.bf16 %v1167, %v1167
        %v1170 = vpack.c.bf16 %v1168, %v1168
        %v1173 = vunpack.c.l.b16 %v1169
        %v1174 = vunpack.c.l.b16 %v1170
        %v1175 = vpack.c.b16 %v1174, %v1173
        %v1176 = vunpack.c.l.b16 %v1121
        %v1177 = vunpack.c.l.b16 %v1122
        %v1178 = vpack.c.b16 %v1177, %v1176
        %v1181 = vsel %vm373, %v1175, 0
        %1183 = vmatpush.bf16.msra.mxu0 0
        %1184 = vmatpush.bf16.msra.mxu0 0
        %1185 = vmatpush.bf16.msra.mxu0 0
        %1186 = vmatpush.bf16.msra.mxu0 0
        %1187 = vmatpush.bf16.msra.mxu0 0
        %1188 = vmatpush.bf16.msra.mxu0 0
        %1189 = vmatpush.bf16.msra.mxu0 0
        %1190 = vmatpush.bf16.msra.mxu0 %v1178
        %1191 = vmatmul.bf16.gmra.mxu0 %v1181
        %v1192 = vpop.f32.mrf.mxu0
        %v1193 = vadd.f32 0.0, %v1192
        %v1194 = vpop.f32.mrf.mxu0
        %v1195 = vadd.f32 0.0, %v1194
        %1196 = vdwg.mxu0
        %v1197 = vpack.c.bf16 %v1193, %v1193
        %v1198 = vpack.c.bf16 %v1195, %v1195
        %s1199 = scalar_lea.vmem [#allocation7], 28
        %v1200 = vld [vmem:[%s1199] sm:$0xf]
        %v1203 = vunpack.c.l.b16 %v1197
        %v1204 = vunpack.c.l.b16 %v1198
        %v1205 = vpack.c.b16 %v1204, %v1203
        %v1207 = vsel %vm352, %v1205, 0
        %v1210 = vsel %vm519, %v1200, 0
        %1212 = vmatpush.bf16.msra.mxu0 0
        %1213 = vmatpush.bf16.msra.mxu0 0
        %1214 = vmatpush.bf16.msra.mxu0 0
        %1215 = vmatpush.bf16.msra.mxu0 0
        %1216 = vmatpush.bf16.msra.mxu0 0
        %1217 = vmatpush.bf16.msra.mxu0 0
        %1218 = vmatpush.bf16.msra.mxu0 0
        %1219 = vmatpush.bf16.msra.mxu0 %v1210
        %1220 = vmatmul.bf16.gmra.mxu0 %v1207
        %v1221 = vpop.f32.mrf.mxu0
        %v1222 = vadd.f32 0.0, %v1221
        %v1223 = vpop.f32.mrf.mxu0
        %v1224 = vadd.f32 0.0, %v1223
        %1225 = vdwg.mxu0
        %v1226 = vadd.f32 %v1115, %v1222
        %v1227 = vadd.f32 %v1116, %v1224
        %v1228 = vld [vmem:[%s3] sm:$0x1]
        %v1230 = vperm.slane %v1228, 0
        %v1232 = vadd.f32 %v1226, %v1230
        %v1233 = vadd.f32 %v1227, %v1230
        %1234 = vst.msk [vmem:[%s250] sm:$0xff] %vm309, %v1232
        %1235 = vst.msk [vmem:[%s250 + $0x8] sm:$0xff] %vm309, %v1233
        %s1236 = sand.u32 %s119, 1
        %s1237 = scalar_lea.sflag [#allocation4], %s1236
        %s1238 = sand.u32 %s119, 1
        %s1239 = smul.addr %s1238, 16
        %s1240 = scalar_lea.vmem [#allocation8], %s1239
        // Predicated region
        $region49: #{tpu_custom_call.1} parent=35 // pred_check
          %p1241 = pneg %p129
        $region50: #{tpu_custom_call.1} parent=35 // pred_check_branch
          %1243 = sbr.rel (%p1241) target = $region52
        $region51: #{tpu_custom_call.1} parent=35 // pred_region
          %s1244 = smul.u32 2, %s22
          %1246 = vsyncadd %s1237, 0
          %s1247 = smul.addr %s1244, 8
          %s1248 = scalar_lea.hbm %s4, %s1247
          %s1249 = sshll.u32 %s1240, 4
          %s1250 = int_to_ptr.vmem [resolvable:$true] %s1249
          %s1251 = sshll.u32 %s1248, 4
          %s1252 = int_to_ptr.hbm [resolvable:$true] %s1251
          %1257 = dma.vmem_to_hbm [thread:$0]  %s1250, 256, %s1252, %s1237, 128, 128, 8
        $region52: #{tpu_custom_call.1} parent=35 // pred_fallthru
          _
      $region36: #{tpu_custom_call.1} parent=5 // pred_fallthru
        _
      %p1258 = scmp.le.s32.totalorder 2, %s17
      // Predicated region
      $region53: #{tpu_custom_call.1} parent=5 // pred_check
        %p1259 = pneg %p1258
      $region54: #{tpu_custom_call.1} parent=5 // pred_check_branch
        %1261 = sbr.rel (%p1259) target = $region56
      $region55: #{tpu_custom_call.1} parent=5 // pred_region
        %s1262 = ssub.s32 %s17, 2
        // Predicated region
        $region57: #{tpu_custom_call.1} parent=55 // pred_check
          %p1263 = pneg %p135
        $region58: #{tpu_custom_call.1} parent=55 // pred_check_branch
          %1265 = sbr.rel (%p1263) target = $region60
        $region59: #{tpu_custom_call.1} parent=55 // pred_region
          %s1266 = sand.u32 %s120, 1
          %s1267 = scalar_lea.sflag [#allocation4], %s1266
          %s1268 = sand.u32 %s120, 1
          %s1269 = smul.addr %s1268, 16
          %s1270 = scalar_lea.vmem [#allocation8], %s1269
          %1272 = dma.done %s1267, 256
        $region60: #{tpu_custom_call.1} parent=55 // pred_fallthru
          _
      $region56: #{tpu_custom_call.1} parent=5 // pred_fallthru
        _
    $region6: #{tpu_custom_call.1} parent=1 // loop_footer
      %s21 = sadd.s32 1, %s17
    $region7: #{tpu_custom_call.1} parent=1 // loop_footer_branch
      %16 = sbr.rel target = $region3
    $region8: #{tpu_custom_call.1} parent=1 // loop_exit
      _
    %1273 = vsyncpa [#allocation3], 1
    %s1274 = scalar_lea.sflag [#allocation3], 1
    %1275 = vsyncpa %s1274, 1
    %1276 = vsyncpa [#allocation6], 1
    %1277 = vsyncpa [#allocation4], 1
    %s1278 = scalar_lea.sflag [#allocation4], 1
    %1279 = vsyncpa %s1278, 1

</llo_original>
